<compile_context>
chip_gen: v7x
topology: tpu7x:2x2x1
jax: 0.10.0
libtpu: 0.0.40
codegen_flags: <defaults>
</compile_context>

<pallas_src>
import functools

import jax
import jax.numpy as jnp
from jax import lax
from jax.experimental import pallas as pl
from jax.experimental.pallas import tpu as pltpu


# ----------------------------------------------------------------------------
# Fused kernel: num_layers LSTM layers (PyTorch gate order i, f, g, o) followed
# by the packed (lane-padded) quantile linear heads.  Time-major inside.
# ----------------------------------------------------------------------------
def _fused_forward_kernel(x_ref, *refs, num_layers, Bt, T, H):
    # refs layout:
    #   [wih_0, whh_0, b_0, ..., wih_{L-1}, whh_{L-1}, b_{L-1},   (inputs)
    #    wq_padded, bq_padded,                                    (inputs)
    #    out_ref,                                                 (output)
    #    xg_sc, hseq_sc]                                          (scratch)
    layer_refs = refs[:3 * num_layers]
    wq_ref, bq_ref, out_ref, xg_sc, hseq_sc = refs[3 * num_layers:]

    # Time-major rows: r = t*Bt + b.
    cur2d = x_ref[...].reshape(T * Bt, x_ref.shape[-1])       # (T*Bt, Din)

    for layer in range(num_layers):
        wih = layer_refs[3 * layer][...]                      # (Din_l, 4H)
        whh = layer_refs[3 * layer + 1][...]                  # (H,    4H)
        b = layer_refs[3 * layer + 2][...]                    # (1,    4H) = b_ih+b_hh

        # Hoisted input projection: one tall MXU call per layer, bias added
        # once.  Parked in VMEM scratch so it is not live in vregs across the
        # whole time loop.
        xg_sc[...] = (jnp.dot(cur2d, wih, preferred_element_type=jnp.float32)
                      + b).reshape(T, Bt, 4 * H)

        def step(t, carry, whh=whh):
            h, c = carry
            # Only this matmul is truly sequential in t.
            gates = xg_sc[t] + jnp.dot(
                h, whh, preferred_element_type=jnp.float32)   # (Bt, 4H)
            sig = jax.nn.sigmoid(gates)                       # 3/4 of 4H used
            i_g = sig[:, 0 * H:1 * H]
            f_g = sig[:, 1 * H:2 * H]
            g_g = jnp.tanh(gates[:, 2 * H:3 * H])             # tanh on g slice only
            o_g = sig[:, 3 * H:4 * H]
            c = f_g * c + i_g * g_g
            h = o_g * jnp.tanh(c)
            hseq_sc[t] = h                                    # contiguous slab store
            return h, c

        h0 = jnp.zeros((Bt, H), jnp.float32)
        c0 = jnp.zeros((Bt, H), jnp.float32)
        lax.fori_loop(0, T, step, (h0, c0), unroll=min(T, 8))

        cur2d = hseq_sc[...].reshape(T * Bt, H)               # time-major rows

    # All quantile heads as one packed matmul; head width is padded to a
    # 128-lane multiple in the wrapper -> one lane-dense (unmasked) store.
    out = (jnp.dot(cur2d, wq_ref[...], preferred_element_type=jnp.float32)
           + bq_ref[...])
    out_ref[...] = out.reshape(out_ref.shape).astype(out_ref.dtype)


# ----------------------------------------------------------------------------
# Wrapper: one pallas_call for the whole forward; tiny reshapes stay in XLA.
# ----------------------------------------------------------------------------
@functools.partial(jax.jit, static_argnames=("cutoff", "output_size"))
def validate_lstm_quantile_forward(x, lstm_params, wq_packed, bq_packed, *,
                                   cutoff, output_size):
    B, T, Din = x.shape
    H = lstm_params[0][1].shape[0]
    L = len(lstm_params)
    O = output_size
    QO = wq_packed.shape[1]
    Q = QO // O
    N = B * T

    # Lane-dense head: pad the packed head width up to a multiple of 128 so
    # the final store is unmasked; padding is sliced off after the call.
    QO_pad = ((QO + 127) // 128) * 128
    wq_pad = jnp.pad(wq_packed, ((0, 0), (0, QO_pad - QO)))
    bq_pad = jnp.pad(bq_packed, ((0, 0), (0, QO_pad - QO)))

    # Time-major input for contiguous per-timestep slabs inside the kernel.
    x_tm = jnp.transpose(x, (1, 0, 2))                        # (T, B, Din)

    # Batch-"parallel" grid (megacore sharding on multi-TC parts).  At these
    # test shapes a single tile; at production pad B to a multiple of 8 and
    # pick the largest B_TILE whose xg tile (B_TILE*T*4H*4 bytes, the dominant
    # VMEM consumer) fits under v7x's 64 MiB VMEM with headroom.
    B_TILE = B
    grid = (B // B_TILE,)

    flat_weights = []
    for (w_ih_t, w_hh_t, bias) in lstm_params:
        flat_weights += [w_ih_t, w_hh_t, bias]

    in_specs = [pl.BlockSpec((T, B_TILE, Din), lambda i: (0, i, 0))]
    in_specs += [pl.BlockSpec(w.shape, lambda i: (0, 0)) for w in flat_weights]
    in_specs += [pl.BlockSpec(wq_pad.shape, lambda i: (0, 0)),
                 pl.BlockSpec(bq_pad.shape, lambda i: (0, 0))]

    kernel = functools.partial(_fused_forward_kernel,
                               num_layers=L, Bt=B_TILE, T=T, H=H)

    out_tm = pl.pallas_call(
        kernel,
        out_shape=jax.ShapeDtypeStruct((T, B, QO_pad), jnp.float32),
        grid=grid,
        in_specs=in_specs,
        out_specs=pl.BlockSpec((T, B_TILE, QO_pad), lambda i: (0, i, 0)),
        scratch_shapes=[
            pltpu.VMEM((T, B_TILE, 4 * H), jnp.float32),      # hoisted projection
            pltpu.VMEM((T, B_TILE, H), jnp.float32),          # hidden sequence
        ],
        compiler_params=pltpu.CompilerParams(
            dimension_semantics=("parallel",),
            vmem_limit_bytes=48 * 1024 * 1024),               # fits all of v5e/v6e/v7x
    )(x_tm, *flat_weights, wq_pad, bq_pad)

    # (T, B, QO_pad) -> slice padded heads -> (Q, B, T, O); flattening B,T then
    # gives rows b*T + t, matching PyTorch's view(-1, H) row order.
    out = out_tm[:, :, :QO].reshape(T, B, Q, O).transpose(2, 1, 0, 3)
    return out.reshape(Q, N // cutoff, cutoff, O)


# ----------------------------------------------------------------------------
# Pure-JAX reference (correctness check).
# ----------------------------------------------------------------------------
def reference_forward(x, lstm_params, q_weights_t, q_biases, cutoff):
    h_seq = x
    for (w_ih_t, w_hh_t, bias) in lstm_params:
        B, T, _ = h_seq.shape
        H = w_hh_t.shape[0]
        h = jnp.zeros((B, H), jnp.float32)
        c = jnp.zeros((B, H), jnp.float32)
        outs = []
        for t in range(T):
            gates = h_seq[:, t, :] @ w_ih_t + h @ w_hh_t + bias
            i_g = jax.nn.sigmoid(gates[:, 0 * H:1 * H])
            f_g = jax.nn.sigmoid(gates[:, 1 * H:2 * H])
            g_g = jnp.tanh(gates[:, 2 * H:3 * H])
            o_g = jax.nn.sigmoid(gates[:, 3 * H:4 * H])
            c = f_g * c + i_g * g_g
            h = o_g * jnp.tanh(c)
            outs.append(h)
        h_seq = jnp.stack(outs, axis=1)
    B, T, H = h_seq.shape
    stacked = h_seq.reshape(B * T, H)
    out = jnp.stack([stacked @ q_weights_t[q] + q_biases[q, 0]
                     for q in range(q_weights_t.shape[0])], axis=0)
    Q, N, O = out.shape
    return out.reshape(Q, N // cutoff, cutoff, O)


# ----------------------------------------------------------------------------
# Deterministic parameter init (PyTorch-style U(-1/sqrt(H), 1/sqrt(H))).
# ----------------------------------------------------------------------------
def init_params(key, quantiles, input_size, hidden_size, num_layers, output_size):
    bound = 1.0 / jnp.sqrt(hidden_size)
    lstm_params = []
    for layer in range(num_layers):
        d_in = input_size if layer == 0 else hidden_size
        key, k1, k2, k3, k4 = jax.random.split(key, 5)
        w_ih = jax.random.uniform(k1, (4 * hidden_size, d_in),
                                  minval=-bound, maxval=bound, dtype=jnp.float32)
        w_hh = jax.random.uniform(k2, (4 * hidden_size, hidden_size),
                                  minval=-bound, maxval=bound, dtype=jnp.float32)
        b_ih = jax.random.uniform(k3, (4 * hidden_size,),
                                  minval=-bound, maxval=bound, dtype=jnp.float32)
        b_hh = jax.random.uniform(k4, (4 * hidden_size,),
                                  minval=-bound, maxval=bound, dtype=jnp.float32)
        # stored transposed for x @ W^T; biases combined, kept 2-D for TPU
        lstm_params.append((w_ih.T, w_hh.T, (b_ih + b_hh)[None, :]))

    Q = len(quantiles)
    lin_bound = 1.0 / jnp.sqrt(hidden_size)
    q_w, q_b = [], []
    for _ in range(Q):
        key, k1, k2 = jax.random.split(key, 3)
        w = jax.random.uniform(k1, (output_size, hidden_size),
                               minval=-lin_bound, maxval=lin_bound,
                               dtype=jnp.float32)
        b = jax.random.uniform(k2, (output_size,),
                               minval=-lin_bound, maxval=lin_bound,
                               dtype=jnp.float32)
        q_w.append(w.T)            # (H, O)
        q_b.append(b[None, :])     # (1, O)
    q_weights_t = jnp.stack(q_w, axis=0)        # (Q, H, O)
    q_biases = jnp.stack(q_b, axis=0)           # (Q, 1, O)
    # Packed forms for the fused kernel: column index = q*O + o.
    wq_packed = q_weights_t.transpose(1, 0, 2).reshape(hidden_size, Q * output_size)
    bq_packed = q_biases.reshape(1, Q * output_size)
    return lstm_params, q_weights_t, q_biases, wq_packed, bq_packed


if __name__ == "__main__":
    quantiles = [0.1, 0.5, 0.9]
    input_size, hidden_size, num_layers, output_size = 4, 32, 2, 4
    cutoff = 4
    B, T = 2, 8                     # B*T = 16 divisible by cutoff

    key = jax.random.PRNGKey(0)
    key, kx = jax.random.split(key)
    x = jax.random.normal(kx, (B, T, input_size), dtype=jnp.float32)

    (lstm_params, q_weights_t, q_biases,
     wq_packed, bq_packed) = init_params(key, quantiles, input_size,
                                         hidden_size, num_layers, output_size)

    out = validate_lstm_quantile_forward(x, tuple(lstm_params), wq_packed,
                                         bq_packed, cutoff=cutoff,
                                         output_size=output_size)
    out = jax.block_until_ready(out)

    expected_shape = (len(quantiles), (B * T) // cutoff, cutoff, output_size)
    assert out.shape == expected_shape, (out.shape, expected_shape)

    ref = reference_forward(x, lstm_params, q_weights_t, q_biases, cutoff)
    # All-f32 path; small slack covers MXU pass-precision and EUP-vs-XLA
    # transcendental implementation differences.
    max_err = float(jnp.max(jnp.abs(out - ref)))
    assert jnp.allclose(out, ref, rtol=2e-4, atol=2e-4), max_err

    print("KERNEL_OK")
</pallas_src>

<mosaic_0001>
module attributes {stable_mosaic.version = 11 : i64} {
  func.func @_fused_forward_kernel(%arg0: i32, %arg1: memref<8x2x4xf32, #tpu.memory_space<vmem>>, %arg2: memref<4x128xf32, #tpu.memory_space<vmem>>, %arg3: memref<32x128xf32, #tpu.memory_space<vmem>>, %arg4: memref<1x128xf32, #tpu.memory_space<vmem>>, %arg5: memref<32x128xf32, #tpu.memory_space<vmem>>, %arg6: memref<32x128xf32, #tpu.memory_space<vmem>>, %arg7: memref<1x128xf32, #tpu.memory_space<vmem>>, %arg8: memref<32x128xf32, #tpu.memory_space<vmem>>, %arg9: memref<1x128xf32, #tpu.memory_space<vmem>>, %arg10: memref<8x2x128xf32, #tpu.memory_space<vmem>>, %arg11: memref<8x2x128xf32, #tpu.memory_space<vmem>>, %arg12: memref<8x2x32xf32, #tpu.memory_space<vmem>>) attributes {dimension_semantics = [#tpu.dimension_semantics<parallel>], iteration_bounds = array<i64: 1>, scalar_prefetch = 0 : i64, scratch_operands = 2 : i64, tpu.core_type = #tpu.core_type<tc>, window_params = [{transform_indices = @transform_0, window_bounds = array<i64: 8, 2, 4>}, {pipeline_mode = #tpu.pipeline_mode<synchronous>, transform_indices = @transform_1, window_bounds = array<i64: 4, 128>}, {pipeline_mode = #tpu.pipeline_mode<synchronous>, transform_indices = @transform_2, window_bounds = array<i64: 32, 128>}, {pipeline_mode = #tpu.pipeline_mode<synchronous>, transform_indices = @transform_3, window_bounds = array<i64: 1, 128>}, {pipeline_mode = #tpu.pipeline_mode<synchronous>, transform_indices = @transform_4, window_bounds = array<i64: 32, 128>}, {pipeline_mode = #tpu.pipeline_mode<synchronous>, transform_indices = @transform_5, window_bounds = array<i64: 32, 128>}, {pipeline_mode = #tpu.pipeline_mode<synchronous>, transform_indices = @transform_6, window_bounds = array<i64: 1, 128>}, {pipeline_mode = #tpu.pipeline_mode<synchronous>, transform_indices = @transform_7, window_bounds = array<i64: 32, 128>}, {pipeline_mode = #tpu.pipeline_mode<synchronous>, transform_indices = @transform_8, window_bounds = array<i64: 1, 128>}, {transform_indices = @transform_9, window_bounds = array<i64: 8, 2, 128>}]} {
    %c0 = arith.constant 0 : index
    %c0_0 = arith.constant 0 : index
    %c0_1 = arith.constant 0 : index
    %0 = vector.load %arg1[%c0, %c0_0, %c0_1] : memref<8x2x4xf32, #tpu.memory_space<vmem>>, vector<8x2x4xf32>
    %1 = vector.shape_cast %0 : vector<8x2x4xf32> to vector<16x4xf32>
    %c0_2 = arith.constant 0 : index
    %c0_3 = arith.constant 0 : index
    %2 = vector.load %arg2[%c0_2, %c0_3] : memref<4x128xf32, #tpu.memory_space<vmem>>, vector<4x128xf32>
    %c0_4 = arith.constant 0 : index
    %c0_5 = arith.constant 0 : index
    %3 = vector.load %arg3[%c0_4, %c0_5] : memref<32x128xf32, #tpu.memory_space<vmem>>, vector<32x128xf32>
    %c0_6 = arith.constant 0 : index
    %c0_7 = arith.constant 0 : index
    %4 = vector.load %arg4[%c0_6, %c0_7] : memref<1x128xf32, #tpu.memory_space<vmem>>, vector<1x128xf32>
    %cst = arith.constant dense<0.000000e+00> : vector<16x128xf32>
    %5 = tpu.matmul %1, %2, %cst {dimension_numbers = #tpu.dot_dimension_numbers<[1], [0], [0], [1], [0, 0, 1, 1], [], []>} : vector<16x4xf32>, vector<4x128xf32>, vector<16x128xf32> -> vector<16x128xf32>
    %6 = vector.broadcast %4 : vector<1x128xf32> to vector<16x128xf32>
    %7 = arith.addf %5, %6 : vector<16x128xf32>
    %8 = vector.shape_cast %7 : vector<16x128xf32> to vector<8x2x128xf32>
    %c0_8 = arith.constant 0 : index
    %c0_9 = arith.constant 0 : index
    %c0_10 = arith.constant 0 : index
    %9 = vector.load %arg11[%c0_8, %c0_9, %c0_10] : memref<8x2x128xf32, #tpu.memory_space<vmem>>, vector<8x2x128xf32>
    tpu.vector_store %arg11[%c0_8, %c0_9, %c0_10], %8 {strides = array<i32>} : memref<8x2x128xf32, #tpu.memory_space<vmem>>, vector<8x2x128xf32>,
    %cst_11 = arith.constant 0.000000e+00 : f32
    %10 = vector.broadcast %cst_11 : f32 to vector<2x32xf32>
    %cst_12 = arith.constant 0.000000e+00 : f32
    %11 = vector.broadcast %cst_12 : f32 to vector<2x32xf32>
    %c0_i32 = arith.constant 0 : i32
    %12 = arith.index_cast %c0_i32 : i32 to index
    %c0_13 = arith.constant 0 : index
    %c0_14 = arith.constant 0 : index
    %13 = vector.load %arg11[%12, %c0_13, %c0_14] : memref<8x2x128xf32, #tpu.memory_space<vmem>>, vector<1x2x128xf32>
    %14 = vector.shape_cast %13 : vector<1x2x128xf32> to vector<2x128xf32>
    %cst_15 = arith.constant dense<0.000000e+00> : vector<2x128xf32>
    %15 = tpu.matmul %10, %3, %cst_15 {dimension_numbers = #tpu.dot_dimension_numbers<[1], [0], [0], [1], [0, 0, 1, 1], [], []>} : vector<2x32xf32>, vector<32x128xf32>, vector<2x128xf32> -> vector<2x128xf32>
    %16 = arith.addf %14, %15 : vector<2x128xf32>
    %17 = arith.negf %16 : vector<2x128xf32>
    %18 = math.exp %17 : vector<2x128xf32>
    %cst_16 = arith.constant 1.000000e+00 : f32
    %19 = vector.broadcast %cst_16 : f32 to vector<2x128xf32>
    %20 = arith.addf %19, %18 : vector<2x128xf32>
    %21 = arith.divf %19, %20 : vector<2x128xf32>
    %22 = vector.extract_strided_slice %21 {offsets = [0, 0], sizes = [2, 32], strides = [1, 1]} : vector<2x128xf32> to vector<2x32xf32>
    %23 = vector.extract_strided_slice %21 {offsets = [0, 32], sizes = [2, 32], strides = [1, 1]} : vector<2x128xf32> to vector<2x32xf32>
    %24 = vector.extract_strided_slice %16 {offsets = [0, 64], sizes = [2, 32], strides = [1, 1]} : vector<2x128xf32> to vector<2x32xf32>
    %25 = math.tanh %24 : vector<2x32xf32>
    %26 = vector.extract_strided_slice %21 {offsets = [0, 96], sizes = [2, 32], strides = [1, 1]} : vector<2x128xf32> to vector<2x32xf32>
    %27 = arith.mulf %23, %11 : vector<2x32xf32>
    %28 = arith.mulf %22, %25 : vector<2x32xf32>
    %29 = arith.addf %27, %28 : vector<2x32xf32>
    %30 = math.tanh %29 : vector<2x32xf32>
    %31 = arith.mulf %26, %30 : vector<2x32xf32>
    %32 = arith.index_cast %c0_i32 : i32 to index
    %c0_17 = arith.constant 0 : index
    %c0_18 = arith.constant 0 : index
    %33 = vector.load %arg12[%32, %c0_17, %c0_18] : memref<8x2x32xf32, #tpu.memory_space<vmem>>, vector<1x2x32xf32>
    %34 = vector.shape_cast %33 : vector<1x2x32xf32> to vector<2x32xf32>
    %35 = vector.shape_cast %31 : vector<2x32xf32> to vector<1x2x32xf32>
    tpu.vector_store %arg12[%32, %c0_17, %c0_18], %35 {strides = array<i32>} : memref<8x2x32xf32, #tpu.memory_space<vmem>>, vector<1x2x32xf32>,
    %c1_i32 = arith.constant 1 : i32
    %36 = arith.index_cast %c1_i32 : i32 to index
    %c0_19 = arith.constant 0 : index
    %c0_20 = arith.constant 0 : index
    %37 = vector.load %arg11[%36, %c0_19, %c0_20] : memref<8x2x128xf32, #tpu.memory_space<vmem>>, vector<1x2x128xf32>
    %38 = vector.shape_cast %37 : vector<1x2x128xf32> to vector<2x128xf32>
    %cst_21 = arith.constant dense<0.000000e+00> : vector<2x128xf32>
    %39 = tpu.matmul %31, %3, %cst_21 {dimension_numbers = #tpu.dot_dimension_numbers<[1], [0], [0], [1], [0, 0, 1, 1], [], []>} : vector<2x32xf32>, vector<32x128xf32>, vector<2x128xf32> -> vector<2x128xf32>
    %40 = arith.addf %38, %39 : vector<2x128xf32>
    %41 = arith.negf %40 : vector<2x128xf32>
    %42 = math.exp %41 : vector<2x128xf32>
    %cst_22 = arith.constant 1.000000e+00 : f32
    %43 = vector.broadcast %cst_22 : f32 to vector<2x128xf32>
    %44 = arith.addf %43, %42 : vector<2x128xf32>
    %45 = arith.divf %43, %44 : vector<2x128xf32>
    %46 = vector.extract_strided_slice %45 {offsets = [0, 0], sizes = [2, 32], strides = [1, 1]} : vector<2x128xf32> to vector<2x32xf32>
    %47 = vector.extract_strided_slice %45 {offsets = [0, 32], sizes = [2, 32], strides = [1, 1]} : vector<2x128xf32> to vector<2x32xf32>
    %48 = vector.extract_strided_slice %40 {offsets = [0, 64], sizes = [2, 32], strides = [1, 1]} : vector<2x128xf32> to vector<2x32xf32>
    %49 = math.tanh %48 : vector<2x32xf32>
    %50 = vector.extract_strided_slice %45 {offsets = [0, 96], sizes = [2, 32], strides = [1, 1]} : vector<2x128xf32> to vector<2x32xf32>
    %51 = arith.mulf %47, %29 : vector<2x32xf32>
    %52 = arith.mulf %46, %49 : vector<2x32xf32>
    %53 = arith.addf %51, %52 : vector<2x32xf32>
    %54 = math.tanh %53 : vector<2x32xf32>
    %55 = arith.mulf %50, %54 : vector<2x32xf32>
    %56 = arith.index_cast %c1_i32 : i32 to index
    %c0_23 = arith.constant 0 : index
    %c0_24 = arith.constant 0 : index
    %57 = vector.load %arg12[%56, %c0_23, %c0_24] : memref<8x2x32xf32, #tpu.memory_space<vmem>>, vector<1x2x32xf32>
    %58 = vector.shape_cast %57 : vector<1x2x32xf32> to vector<2x32xf32>
    %59 = vector.shape_cast %55 : vector<2x32xf32> to vector<1x2x32xf32>
    tpu.vector_store %arg12[%56, %c0_23, %c0_24], %59 {strides = array<i32>} : memref<8x2x32xf32, #tpu.memory_space<vmem>>, vector<1x2x32xf32>,
    %c2_i32 = arith.constant 2 : i32
    %60 = arith.index_cast %c2_i32 : i32 to index
    %c0_25 = arith.constant 0 : index
    %c0_26 = arith.constant 0 : index
    %61 = vector.load %arg11[%60, %c0_25, %c0_26] : memref<8x2x128xf32, #tpu.memory_space<vmem>>, vector<1x2x128xf32>
    %62 = vector.shape_cast %61 : vector<1x2x128xf32> to vector<2x128xf32>
    %cst_27 = arith.constant dense<0.000000e+00> : vector<2x128xf32>
    %63 = tpu.matmul %55, %3, %cst_27 {dimension_numbers = #tpu.dot_dimension_numbers<[1], [0], [0], [1], [0, 0, 1, 1], [], []>} : vector<2x32xf32>, vector<32x128xf32>, vector<2x128xf32> -> vector<2x128xf32>
    %64 = arith.addf %62, %63 : vector<2x128xf32>
    %65 = arith.negf %64 : vector<2x128xf32>
    %66 = math.exp %65 : vector<2x128xf32>
    %cst_28 = arith.constant 1.000000e+00 : f32
    %67 = vector.broadcast %cst_28 : f32 to vector<2x128xf32>
    %68 = arith.addf %67, %66 : vector<2x128xf32>
    %69 = arith.divf %67, %68 : vector<2x128xf32>
    %70 = vector.extract_strided_slice %69 {offsets = [0, 0], sizes = [2, 32], strides = [1, 1]} : vector<2x128xf32> to vector<2x32xf32>
    %71 = vector.extract_strided_slice %69 {offsets = [0, 32], sizes = [2, 32], strides = [1, 1]} : vector<2x128xf32> to vector<2x32xf32>
    %72 = vector.extract_strided_slice %64 {offsets = [0, 64], sizes = [2, 32], strides = [1, 1]} : vector<2x128xf32> to vector<2x32xf32>
    %73 = math.tanh %72 : vector<2x32xf32>
    %74 = vector.extract_strided_slice %69 {offsets = [0, 96], sizes = [2, 32], strides = [1, 1]} : vector<2x128xf32> to vector<2x32xf32>
    %75 = arith.mulf %71, %53 : vector<2x32xf32>
    %76 = arith.mulf %70, %73 : vector<2x32xf32>
    %77 = arith.addf %75, %76 : vector<2x32xf32>
    %78 = math.tanh %77 : vector<2x32xf32>
    %79 = arith.mulf %74, %78 : vector<2x32xf32>
    %80 = arith.index_cast %c2_i32 : i32 to index
    %c0_29 = arith.constant 0 : index
    %c0_30 = arith.constant 0 : index
    %81 = vector.load %arg12[%80, %c0_29, %c0_30] : memref<8x2x32xf32, #tpu.memory_space<vmem>>, vector<1x2x32xf32>
    %82 = vector.shape_cast %81 : vector<1x2x32xf32> to vector<2x32xf32>
    %83 = vector.shape_cast %79 : vector<2x32xf32> to vector<1x2x32xf32>
    tpu.vector_store %arg12[%80, %c0_29, %c0_30], %83 {strides = array<i32>} : memref<8x2x32xf32, #tpu.memory_space<vmem>>, vector<1x2x32xf32>,
    %c3_i32 = arith.constant 3 : i32
    %84 = arith.index_cast %c3_i32 : i32 to index
    %c0_31 = arith.constant 0 : index
    %c0_32 = arith.constant 0 : index
    %85 = vector.load %arg11[%84, %c0_31, %c0_32] : memref<8x2x128xf32, #tpu.memory_space<vmem>>, vector<1x2x128xf32>
    %86 = vector.shape_cast %85 : vector<1x2x128xf32> to vector<2x128xf32>
    %cst_33 = arith.constant dense<0.000000e+00> : vector<2x128xf32>
    %87 = tpu.matmul %79, %3, %cst_33 {dimension_numbers = #tpu.dot_dimension_numbers<[1], [0], [0], [1], [0, 0, 1, 1], [], []>} : vector<2x32xf32>, vector<32x128xf32>, vector<2x128xf32> -> vector<2x128xf32>
    %88 = arith.addf %86, %87 : vector<2x128xf32>
    %89 = arith.negf %88 : vector<2x128xf32>
    %90 = math.exp %89 : vector<2x128xf32>
    %cst_34 = arith.constant 1.000000e+00 : f32
    %91 = vector.broadcast %cst_34 : f32 to vector<2x128xf32>
    %92 = arith.addf %91, %90 : vector<2x128xf32>
    %93 = arith.divf %91, %92 : vector<2x128xf32>
    %94 = vector.extract_strided_slice %93 {offsets = [0, 0], sizes = [2, 32], strides = [1, 1]} : vector<2x128xf32> to vector<2x32xf32>
    %95 = vector.extract_strided_slice %93 {offsets = [0, 32], sizes = [2, 32], strides = [1, 1]} : vector<2x128xf32> to vector<2x32xf32>
    %96 = vector.extract_strided_slice %88 {offsets = [0, 64], sizes = [2, 32], strides = [1, 1]} : vector<2x128xf32> to vector<2x32xf32>
    %97 = math.tanh %96 : vector<2x32xf32>
    %98 = vector.extract_strided_slice %93 {offsets = [0, 96], sizes = [2, 32], strides = [1, 1]} : vector<2x128xf32> to vector<2x32xf32>
    %99 = arith.mulf %95, %77 : vector<2x32xf32>
    %100 = arith.mulf %94, %97 : vector<2x32xf32>
    %101 = arith.addf %99, %100 : vector<2x32xf32>
    %102 = math.tanh %101 : vector<2x32xf32>
    %103 = arith.mulf %98, %102 : vector<2x32xf32>
    %104 = arith.index_cast %c3_i32 : i32 to index
    %c0_35 = arith.constant 0 : index
    %c0_36 = arith.constant 0 : index
    %105 = vector.load %arg12[%104, %c0_35, %c0_36] : memref<8x2x32xf32, #tpu.memory_space<vmem>>, vector<1x2x32xf32>
    %106 = vector.shape_cast %105 : vector<1x2x32xf32> to vector<2x32xf32>
    %107 = vector.shape_cast %103 : vector<2x32xf32> to vector<1x2x32xf32>
    tpu.vector_store %arg12[%104, %c0_35, %c0_36], %107 {strides = array<i32>} : memref<8x2x32xf32, #tpu.memory_space<vmem>>, vector<1x2x32xf32>,
    %c4_i32 = arith.constant 4 : i32
    %108 = arith.index_cast %c4_i32 : i32 to index
    %c0_37 = arith.constant 0 : index
    %c0_38 = arith.constant 0 : index
    %109 = vector.load %arg11[%108, %c0_37, %c0_38] : memref<8x2x128xf32, #tpu.memory_space<vmem>>, vector<1x2x128xf32>
    %110 = vector.shape_cast %109 : vector<1x2x128xf32> to vector<2x128xf32>
    %cst_39 = arith.constant dense<0.000000e+00> : vector<2x128xf32>
    %111 = tpu.matmul %103, %3, %cst_39 {dimension_numbers = #tpu.dot_dimension_numbers<[1], [0], [0], [1], [0, 0, 1, 1], [], []>} : vector<2x32xf32>, vector<32x128xf32>, vector<2x128xf32> -> vector<2x128xf32>
    %112 = arith.addf %110, %111 : vector<2x128xf32>
    %113 = arith.negf %112 : vector<2x128xf32>
    %114 = math.exp %113 : vector<2x128xf32>
    %cst_40 = arith.constant 1.000000e+00 : f32
    %115 = vector.broadcast %cst_40 : f32 to vector<2x128xf32>
    %116 = arith.addf %115, %114 : vector<2x128xf32>
    %117 = arith.divf %115, %116 : vector<2x128xf32>
    %118 = vector.extract_strided_slice %117 {offsets = [0, 0], sizes = [2, 32], strides = [1, 1]} : vector<2x128xf32> to vector<2x32xf32>
    %119 = vector.extract_strided_slice %117 {offsets = [0, 32], sizes = [2, 32], strides = [1, 1]} : vector<2x128xf32> to vector<2x32xf32>
    %120 = vector.extract_strided_slice %112 {offsets = [0, 64], sizes = [2, 32], strides = [1, 1]} : vector<2x128xf32> to vector<2x32xf32>
    %121 = math.tanh %120 : vector<2x32xf32>
    %122 = vector.extract_strided_slice %117 {offsets = [0, 96], sizes = [2, 32], strides = [1, 1]} : vector<2x128xf32> to vector<2x32xf32>
    %123 = arith.mulf %119, %101 : vector<2x32xf32>
    %124 = arith.mulf %118, %121 : vector<2x32xf32>
    %125 = arith.addf %123, %124 : vector<2x32xf32>
    %126 = math.tanh %125 : vector<2x32xf32>
    %127 = arith.mulf %122, %126 : vector<2x32xf32>
    %128 = arith.index_cast %c4_i32 : i32 to index
    %c0_41 = arith.constant 0 : index
    %c0_42 = arith.constant 0 : index
    %129 = vector.load %arg12[%128, %c0_41, %c0_42] : memref<8x2x32xf32, #tpu.memory_space<vmem>>, vector<1x2x32xf32>
    %130 = vector.shape_cast %129 : vector<1x2x32xf32> to vector<2x32xf32>
    %131 = vector.shape_cast %127 : vector<2x32xf32> to vector<1x2x32xf32>
    tpu.vector_store %arg12[%128, %c0_41, %c0_42], %131 {strides = array<i32>} : memref<8x2x32xf32, #tpu.memory_space<vmem>>, vector<1x2x32xf32>,
    %c5_i32 = arith.constant 5 : i32
    %132 = arith.index_cast %c5_i32 : i32 to index
    %c0_43 = arith.constant 0 : index
    %c0_44 = arith.constant 0 : index
    %133 = vector.load %arg11[%132, %c0_43, %c0_44] : memref<8x2x128xf32, #tpu.memory_space<vmem>>, vector<1x2x128xf32>
    %134 = vector.shape_cast %133 : vector<1x2x128xf32> to vector<2x128xf32>
    %cst_45 = arith.constant dense<0.000000e+00> : vector<2x128xf32>
    %135 = tpu.matmul %127, %3, %cst_45 {dimension_numbers = #tpu.dot_dimension_numbers<[1], [0], [0], [1], [0, 0, 1, 1], [], []>} : vector<2x32xf32>, vector<32x128xf32>, vector<2x128xf32> -> vector<2x128xf32>
    %136 = arith.addf %134, %135 : vector<2x128xf32>
    %137 = arith.negf %136 : vector<2x128xf32>
    %138 = math.exp %137 : vector<2x128xf32>
    %cst_46 = arith.constant 1.000000e+00 : f32
    %139 = vector.broadcast %cst_46 : f32 to vector<2x128xf32>
    %140 = arith.addf %139, %138 : vector<2x128xf32>
    %141 = arith.divf %139, %140 : vector<2x128xf32>
    %142 = vector.extract_strided_slice %141 {offsets = [0, 0], sizes = [2, 32], strides = [1, 1]} : vector<2x128xf32> to vector<2x32xf32>
    %143 = vector.extract_strided_slice %141 {offsets = [0, 32], sizes = [2, 32], strides = [1, 1]} : vector<2x128xf32> to vector<2x32xf32>
    %144 = vector.extract_strided_slice %136 {offsets = [0, 64], sizes = [2, 32], strides = [1, 1]} : vector<2x128xf32> to vector<2x32xf32>
    %145 = math.tanh %144 : vector<2x32xf32>
    %146 = vector.extract_strided_slice %141 {offsets = [0, 96], sizes = [2, 32], strides = [1, 1]} : vector<2x128xf32> to vector<2x32xf32>
    %147 = arith.mulf %143, %125 : vector<2x32xf32>
    %148 = arith.mulf %142, %145 : vector<2x32xf32>
    %149 = arith.addf %147, %148 : vector<2x32xf32>
    %150 = math.tanh %149 : vector<2x32xf32>
    %151 = arith.mulf %146, %150 : vector<2x32xf32>
    %152 = arith.index_cast %c5_i32 : i32 to index
    %c0_47 = arith.constant 0 : index
    %c0_48 = arith.constant 0 : index
    %153 = vector.load %arg12[%152, %c0_47, %c0_48] : memref<8x2x32xf32, #tpu.memory_space<vmem>>, vector<1x2x32xf32>
    %154 = vector.shape_cast %153 : vector<1x2x32xf32> to vector<2x32xf32>
    %155 = vector.shape_cast %151 : vector<2x32xf32> to vector<1x2x32xf32>
    tpu.vector_store %arg12[%152, %c0_47, %c0_48], %155 {strides = array<i32>} : memref<8x2x32xf32, #tpu.memory_space<vmem>>, vector<1x2x32xf32>,
    %c6_i32 = arith.constant 6 : i32
    %156 = arith.index_cast %c6_i32 : i32 to index
    %c0_49 = arith.constant 0 : index
    %c0_50 = arith.constant 0 : index
    %157 = vector.load %arg11[%156, %c0_49, %c0_50] : memref<8x2x128xf32, #tpu.memory_space<vmem>>, vector<1x2x128xf32>
    %158 = vector.shape_cast %157 : vector<1x2x128xf32> to vector<2x128xf32>
    %cst_51 = arith.constant dense<0.000000e+00> : vector<2x128xf32>
    %159 = tpu.matmul %151, %3, %cst_51 {dimension_numbers = #tpu.dot_dimension_numbers<[1], [0], [0], [1], [0, 0, 1, 1], [], []>} : vector<2x32xf32>, vector<32x128xf32>, vector<2x128xf32> -> vector<2x128xf32>
    %160 = arith.addf %158, %159 : vector<2x128xf32>
    %161 = arith.negf %160 : vector<2x128xf32>
    %162 = math.exp %161 : vector<2x128xf32>
    %cst_52 = arith.constant 1.000000e+00 : f32
    %163 = vector.broadcast %cst_52 : f32 to vector<2x128xf32>
    %164 = arith.addf %163, %162 : vector<2x128xf32>
    %165 = arith.divf %163, %164 : vector<2x128xf32>
    %166 = vector.extract_strided_slice %165 {offsets = [0, 0], sizes = [2, 32], strides = [1, 1]} : vector<2x128xf32> to vector<2x32xf32>
    %167 = vector.extract_strided_slice %165 {offsets = [0, 32], sizes = [2, 32], strides = [1, 1]} : vector<2x128xf32> to vector<2x32xf32>
    %168 = vector.extract_strided_slice %160 {offsets = [0, 64], sizes = [2, 32], strides = [1, 1]} : vector<2x128xf32> to vector<2x32xf32>
    %169 = math.tanh %168 : vector<2x32xf32>
    %170 = vector.extract_strided_slice %165 {offsets = [0, 96], sizes = [2, 32], strides = [1, 1]} : vector<2x128xf32> to vector<2x32xf32>
    %171 = arith.mulf %167, %149 : vector<2x32xf32>
    %172 = arith.mulf %166, %169 : vector<2x32xf32>
    %173 = arith.addf %171, %172 : vector<2x32xf32>
    %174 = math.tanh %173 : vector<2x32xf32>
    %175 = arith.mulf %170, %174 : vector<2x32xf32>
    %176 = arith.index_cast %c6_i32 : i32 to index
    %c0_53 = arith.constant 0 : index
    %c0_54 = arith.constant 0 : index
    %177 = vector.load %arg12[%176, %c0_53, %c0_54] : memref<8x2x32xf32, #tpu.memory_space<vmem>>, vector<1x2x32xf32>
    %178 = vector.shape_cast %177 : vector<1x2x32xf32> to vector<2x32xf32>
    %179 = vector.shape_cast %175 : vector<2x32xf32> to vector<1x2x32xf32>
    tpu.vector_store %arg12[%176, %c0_53, %c0_54], %179 {strides = array<i32>} : memref<8x2x32xf32, #tpu.memory_space<vmem>>, vector<1x2x32xf32>,
    %c7_i32 = arith.constant 7 : i32
    %180 = arith.index_cast %c7_i32 : i32 to index
    %c0_55 = arith.constant 0 : index
    %c0_56 = arith.constant 0 : index
    %181 = vector.load %arg11[%180, %c0_55, %c0_56] : memref<8x2x128xf32, #tpu.memory_space<vmem>>, vector<1x2x128xf32>
    %182 = vector.shape_cast %181 : vector<1x2x128xf32> to vector<2x128xf32>
    %cst_57 = arith.constant dense<0.000000e+00> : vector<2x128xf32>
    %183 = tpu.matmul %175, %3, %cst_57 {dimension_numbers = #tpu.dot_dimension_numbers<[1], [0], [0], [1], [0, 0, 1, 1], [], []>} : vector<2x32xf32>, vector<32x128xf32>, vector<2x128xf32> -> vector<2x128xf32>
    %184 = arith.addf %182, %183 : vector<2x128xf32>
    %185 = arith.negf %184 : vector<2x128xf32>
    %186 = math.exp %185 : vector<2x128xf32>
    %cst_58 = arith.constant 1.000000e+00 : f32
    %187 = vector.broadcast %cst_58 : f32 to vector<2x128xf32>
    %188 = arith.addf %187, %186 : vector<2x128xf32>
    %189 = arith.divf %187, %188 : vector<2x128xf32>
    %190 = vector.extract_strided_slice %189 {offsets = [0, 0], sizes = [2, 32], strides = [1, 1]} : vector<2x128xf32> to vector<2x32xf32>
    %191 = vector.extract_strided_slice %189 {offsets = [0, 32], sizes = [2, 32], strides = [1, 1]} : vector<2x128xf32> to vector<2x32xf32>
    %192 = vector.extract_strided_slice %184 {offsets = [0, 64], sizes = [2, 32], strides = [1, 1]} : vector<2x128xf32> to vector<2x32xf32>
    %193 = math.tanh %192 : vector<2x32xf32>
    %194 = vector.extract_strided_slice %189 {offsets = [0, 96], sizes = [2, 32], strides = [1, 1]} : vector<2x128xf32> to vector<2x32xf32>
    %195 = arith.mulf %191, %173 : vector<2x32xf32>
    %196 = arith.mulf %190, %193 : vector<2x32xf32>
    %197 = arith.addf %195, %196 : vector<2x32xf32>
    %198 = math.tanh %197 : vector<2x32xf32>
    %199 = arith.mulf %194, %198 : vector<2x32xf32>
    %200 = arith.index_cast %c7_i32 : i32 to index
    %c0_59 = arith.constant 0 : index
    %c0_60 = arith.constant 0 : index
    %201 = vector.load %arg12[%200, %c0_59, %c0_60] : memref<8x2x32xf32, #tpu.memory_space<vmem>>, vector<1x2x32xf32>
    %202 = vector.shape_cast %201 : vector<1x2x32xf32> to vector<2x32xf32>
    %203 = vector.shape_cast %199 : vector<2x32xf32> to vector<1x2x32xf32>
    tpu.vector_store %arg12[%200, %c0_59, %c0_60], %203 {strides = array<i32>} : memref<8x2x32xf32, #tpu.memory_space<vmem>>, vector<1x2x32xf32>,
    %c8_i32 = arith.constant 8 : i32
    %c0_61 = arith.constant 0 : index
    %c0_62 = arith.constant 0 : index
    %c0_63 = arith.constant 0 : index
    %204 = vector.load %arg12[%c0_61, %c0_62, %c0_63] : memref<8x2x32xf32, #tpu.memory_space<vmem>>, vector<8x2x32xf32>
    %205 = vector.shape_cast %204 : vector<8x2x32xf32> to vector<16x32xf32>
    %c0_64 = arith.constant 0 : index
    %c0_65 = arith.constant 0 : index
    %206 = vector.load %arg5[%c0_64, %c0_65] : memref<32x128xf32, #tpu.memory_space<vmem>>, vector<32x128xf32>
    %c0_66 = arith.constant 0 : index
    %c0_67 = arith.constant 0 : index
    %207 = vector.load %arg6[%c0_66, %c0_67] : memref<32x128xf32, #tpu.memory_space<vmem>>, vector<32x128xf32>
    %c0_68 = arith.constant 0 : index
    %c0_69 = arith.constant 0 : index
    %208 = vector.load %arg7[%c0_68, %c0_69] : memref<1x128xf32, #tpu.memory_space<vmem>>, vector<1x128xf32>
    %cst_70 = arith.constant dense<0.000000e+00> : vector<16x128xf32>
    %209 = tpu.matmul %205, %206, %cst_70 {dimension_numbers = #tpu.dot_dimension_numbers<[1], [0], [0], [1], [0, 0, 1, 1], [], []>} : vector<16x32xf32>, vector<32x128xf32>, vector<16x128xf32> -> vector<16x128xf32>
    %210 = vector.broadcast %208 : vector<1x128xf32> to vector<16x128xf32>
    %211 = arith.addf %209, %210 : vector<16x128xf32>
    %212 = vector.shape_cast %211 : vector<16x128xf32> to vector<8x2x128xf32>
    %c0_71 = arith.constant 0 : index
    %c0_72 = arith.constant 0 : index
    %c0_73 = arith.constant 0 : index
    %213 = vector.load %arg11[%c0_71, %c0_72, %c0_73] : memref<8x2x128xf32, #tpu.memory_space<vmem>>, vector<8x2x128xf32>
    tpu.vector_store %arg11[%c0_71, %c0_72, %c0_73], %212 {strides = array<i32>} : memref<8x2x128xf32, #tpu.memory_space<vmem>>, vector<8x2x128xf32>,
    %cst_74 = arith.constant 0.000000e+00 : f32
    %214 = vector.broadcast %cst_74 : f32 to vector<2x32xf32>
    %cst_75 = arith.constant 0.000000e+00 : f32
    %215 = vector.broadcast %cst_75 : f32 to vector<2x32xf32>
    %c0_i32_76 = arith.constant 0 : i32
    %216 = arith.index_cast %c0_i32_76 : i32 to index
    %c0_77 = arith.constant 0 : index
    %c0_78 = arith.constant 0 : index
    %217 = vector.load %arg11[%216, %c0_77, %c0_78] : memref<8x2x128xf32, #tpu.memory_space<vmem>>, vector<1x2x128xf32>
    %218 = vector.shape_cast %217 : vector<1x2x128xf32> to vector<2x128xf32>
    %cst_79 = arith.constant dense<0.000000e+00> : vector<2x128xf32>
    %219 = tpu.matmul %214, %207, %cst_79 {dimension_numbers = #tpu.dot_dimension_numbers<[1], [0], [0], [1], [0, 0, 1, 1], [], []>} : vector<2x32xf32>, vector<32x128xf32>, vector<2x128xf32> -> vector<2x128xf32>
    %220 = arith.addf %218, %219 : vector<2x128xf32>
    %221 = arith.negf %220 : vector<2x128xf32>
    %222 = math.exp %221 : vector<2x128xf32>
    %cst_80 = arith.constant 1.000000e+00 : f32
    %223 = vector.broadcast %cst_80 : f32 to vector<2x128xf32>
    %224 = arith.addf %223, %222 : vector<2x128xf32>
    %225 = arith.divf %223, %224 : vector<2x128xf32>
    %226 = vector.extract_strided_slice %225 {offsets = [0, 0], sizes = [2, 32], strides = [1, 1]} : vector<2x128xf32> to vector<2x32xf32>
    %227 = vector.extract_strided_slice %225 {offsets = [0, 32], sizes = [2, 32], strides = [1, 1]} : vector<2x128xf32> to vector<2x32xf32>
    %228 = vector.extract_strided_slice %220 {offsets = [0, 64], sizes = [2, 32], strides = [1, 1]} : vector<2x128xf32> to vector<2x32xf32>
    %229 = math.tanh %228 : vector<2x32xf32>
    %230 = vector.extract_strided_slice %225 {offsets = [0, 96], sizes = [2, 32], strides = [1, 1]} : vector<2x128xf32> to vector<2x32xf32>
    %231 = arith.mulf %227, %215 : vector<2x32xf32>
    %232 = arith.mulf %226, %229 : vector<2x32xf32>
    %233 = arith.addf %231, %232 : vector<2x32xf32>
    %234 = math.tanh %233 : vector<2x32xf32>
    %235 = arith.mulf %230, %234 : vector<2x32xf32>
    %236 = arith.index_cast %c0_i32_76 : i32 to index
    %c0_81 = arith.constant 0 : index
    %c0_82 = arith.constant 0 : index
    %237 = vector.load %arg12[%236, %c0_81, %c0_82] : memref<8x2x32xf32, #tpu.memory_space<vmem>>, vector<1x2x32xf32>
    %238 = vector.shape_cast %237 : vector<1x2x32xf32> to vector<2x32xf32>
    %239 = vector.shape_cast %235 : vector<2x32xf32> to vector<1x2x32xf32>
    tpu.vector_store %arg12[%236, %c0_81, %c0_82], %239 {strides = array<i32>} : memref<8x2x32xf32, #tpu.memory_space<vmem>>, vector<1x2x32xf32>,
    %c1_i32_83 = arith.constant 1 : i32
    %240 = arith.index_cast %c1_i32_83 : i32 to index
    %c0_84 = arith.constant 0 : index
    %c0_85 = arith.constant 0 : index
    %241 = vector.load %arg11[%240, %c0_84, %c0_85] : memref<8x2x128xf32, #tpu.memory_space<vmem>>, vector<1x2x128xf32>
    %242 = vector.shape_cast %241 : vector<1x2x128xf32> to vector<2x128xf32>
    %cst_86 = arith.constant dense<0.000000e+00> : vector<2x128xf32>
    %243 = tpu.matmul %235, %207, %cst_86 {dimension_numbers = #tpu.dot_dimension_numbers<[1], [0], [0], [1], [0, 0, 1, 1], [], []>} : vector<2x32xf32>, vector<32x128xf32>, vector<2x128xf32> -> vector<2x128xf32>
    %244 = arith.addf %242, %243 : vector<2x128xf32>
    %245 = arith.negf %244 : vector<2x128xf32>
    %246 = math.exp %245 : vector<2x128xf32>
    %cst_87 = arith.constant 1.000000e+00 : f32
    %247 = vector.broadcast %cst_87 : f32 to vector<2x128xf32>
    %248 = arith.addf %247, %246 : vector<2x128xf32>
    %249 = arith.divf %247, %248 : vector<2x128xf32>
    %250 = vector.extract_strided_slice %249 {offsets = [0, 0], sizes = [2, 32], strides = [1, 1]} : vector<2x128xf32> to vector<2x32xf32>
    %251 = vector.extract_strided_slice %249 {offsets = [0, 32], sizes = [2, 32], strides = [1, 1]} : vector<2x128xf32> to vector<2x32xf32>
    %252 = vector.extract_strided_slice %244 {offsets = [0, 64], sizes = [2, 32], strides = [1, 1]} : vector<2x128xf32> to vector<2x32xf32>
    %253 = math.tanh %252 : vector<2x32xf32>
    %254 = vector.extract_strided_slice %249 {offsets = [0, 96], sizes = [2, 32], strides = [1, 1]} : vector<2x128xf32> to vector<2x32xf32>
    %255 = arith.mulf %251, %233 : vector<2x32xf32>
    %256 = arith.mulf %250, %253 : vector<2x32xf32>
    %257 = arith.addf %255, %256 : vector<2x32xf32>
    %258 = math.tanh %257 : vector<2x32xf32>
    %259 = arith.mulf %254, %258 : vector<2x32xf32>
    %260 = arith.index_cast %c1_i32_83 : i32 to index
    %c0_88 = arith.constant 0 : index
    %c0_89 = arith.constant 0 : index
    %261 = vector.load %arg12[%260, %c0_88, %c0_89] : memref<8x2x32xf32, #tpu.memory_space<vmem>>, vector<1x2x32xf32>
    %262 = vector.shape_cast %261 : vector<1x2x32xf32> to vector<2x32xf32>
    %263 = vector.shape_cast %259 : vector<2x32xf32> to vector<1x2x32xf32>
    tpu.vector_store %arg12[%260, %c0_88, %c0_89], %263 {strides = array<i32>} : memref<8x2x32xf32, #tpu.memory_space<vmem>>, vector<1x2x32xf32>,
    %c2_i32_90 = arith.constant 2 : i32
    %264 = arith.index_cast %c2_i32_90 : i32 to index
    %c0_91 = arith.constant 0 : index
    %c0_92 = arith.constant 0 : index
    %265 = vector.load %arg11[%264, %c0_91, %c0_92] : memref<8x2x128xf32, #tpu.memory_space<vmem>>, vector<1x2x128xf32>
    %266 = vector.shape_cast %265 : vector<1x2x128xf32> to vector<2x128xf32>
    %cst_93 = arith.constant dense<0.000000e+00> : vector<2x128xf32>
    %267 = tpu.matmul %259, %207, %cst_93 {dimension_numbers = #tpu.dot_dimension_numbers<[1], [0], [0], [1], [0, 0, 1, 1], [], []>} : vector<2x32xf32>, vector<32x128xf32>, vector<2x128xf32> -> vector<2x128xf32>
    %268 = arith.addf %266, %267 : vector<2x128xf32>
    %269 = arith.negf %268 : vector<2x128xf32>
    %270 = math.exp %269 : vector<2x128xf32>
    %cst_94 = arith.constant 1.000000e+00 : f32
    %271 = vector.broadcast %cst_94 : f32 to vector<2x128xf32>
    %272 = arith.addf %271, %270 : vector<2x128xf32>
    %273 = arith.divf %271, %272 : vector<2x128xf32>
    %274 = vector.extract_strided_slice %273 {offsets = [0, 0], sizes = [2, 32], strides = [1, 1]} : vector<2x128xf32> to vector<2x32xf32>
    %275 = vector.extract_strided_slice %273 {offsets = [0, 32], sizes = [2, 32], strides = [1, 1]} : vector<2x128xf32> to vector<2x32xf32>
    %276 = vector.extract_strided_slice %268 {offsets = [0, 64], sizes = [2, 32], strides = [1, 1]} : vector<2x128xf32> to vector<2x32xf32>
    %277 = math.tanh %276 : vector<2x32xf32>
    %278 = vector.extract_strided_slice %273 {offsets = [0, 96], sizes = [2, 32], strides = [1, 1]} : vector<2x128xf32> to vector<2x32xf32>
    %279 = arith.mulf %275, %257 : vector<2x32xf32>
    %280 = arith.mulf %274, %277 : vector<2x32xf32>
    %281 = arith.addf %279, %280 : vector<2x32xf32>
    %282 = math.tanh %281 : vector<2x32xf32>
    %283 = arith.mulf %278, %282 : vector<2x32xf32>
    %284 = arith.index_cast %c2_i32_90 : i32 to index
    %c0_95 = arith.constant 0 : index
    %c0_96 = arith.constant 0 : index
    %285 = vector.load %arg12[%284, %c0_95, %c0_96] : memref<8x2x32xf32, #tpu.memory_space<vmem>>, vector<1x2x32xf32>
    %286 = vector.shape_cast %285 : vector<1x2x32xf32> to vector<2x32xf32>
    %287 = vector.shape_cast %283 : vector<2x32xf32> to vector<1x2x32xf32>
    tpu.vector_store %arg12[%284, %c0_95, %c0_96], %287 {strides = array<i32>} : memref<8x2x32xf32, #tpu.memory_space<vmem>>, vector<1x2x32xf32>,
    %c3_i32_97 = arith.constant 3 : i32
    %288 = arith.index_cast %c3_i32_97 : i32 to index
    %c0_98 = arith.constant 0 : index
    %c0_99 = arith.constant 0 : index
    %289 = vector.load %arg11[%288, %c0_98, %c0_99] : memref<8x2x128xf32, #tpu.memory_space<vmem>>, vector<1x2x128xf32>
    %290 = vector.shape_cast %289 : vector<1x2x128xf32> to vector<2x128xf32>
    %cst_100 = arith.constant dense<0.000000e+00> : vector<2x128xf32>
    %291 = tpu.matmul %283, %207, %cst_100 {dimension_numbers = #tpu.dot_dimension_numbers<[1], [0], [0], [1], [0, 0, 1, 1], [], []>} : vector<2x32xf32>, vector<32x128xf32>, vector<2x128xf32> -> vector<2x128xf32>
    %292 = arith.addf %290, %291 : vector<2x128xf32>
    %293 = arith.negf %292 : vector<2x128xf32>
    %294 = math.exp %293 : vector<2x128xf32>
    %cst_101 = arith.constant 1.000000e+00 : f32
    %295 = vector.broadcast %cst_101 : f32 to vector<2x128xf32>
    %296 = arith.addf %295, %294 : vector<2x128xf32>
    %297 = arith.divf %295, %296 : vector<2x128xf32>
    %298 = vector.extract_strided_slice %297 {offsets = [0, 0], sizes = [2, 32], strides = [1, 1]} : vector<2x128xf32> to vector<2x32xf32>
    %299 = vector.extract_strided_slice %297 {offsets = [0, 32], sizes = [2, 32], strides = [1, 1]} : vector<2x128xf32> to vector<2x32xf32>
    %300 = vector.extract_strided_slice %292 {offsets = [0, 64], sizes = [2, 32], strides = [1, 1]} : vector<2x128xf32> to vector<2x32xf32>
    %301 = math.tanh %300 : vector<2x32xf32>
    %302 = vector.extract_strided_slice %297 {offsets = [0, 96], sizes = [2, 32], strides = [1, 1]} : vector<2x128xf32> to vector<2x32xf32>
    %303 = arith.mulf %299, %281 : vector<2x32xf32>
    %304 = arith.mulf %298, %301 : vector<2x32xf32>
    %305 = arith.addf %303, %304 : vector<2x32xf32>
    %306 = math.tanh %305 : vector<2x32xf32>
    %307 = arith.mulf %302, %306 : vector<2x32xf32>
    %308 = arith.index_cast %c3_i32_97 : i32 to index
    %c0_102 = arith.constant 0 : index
    %c0_103 = arith.constant 0 : index
    %309 = vector.load %arg12[%308, %c0_102, %c0_103] : memref<8x2x32xf32, #tpu.memory_space<vmem>>, vector<1x2x32xf32>
    %310 = vector.shape_cast %309 : vector<1x2x32xf32> to vector<2x32xf32>
    %311 = vector.shape_cast %307 : vector<2x32xf32> to vector<1x2x32xf32>
    tpu.vector_store %arg12[%308, %c0_102, %c0_103], %311 {strides = array<i32>} : memref<8x2x32xf32, #tpu.memory_space<vmem>>, vector<1x2x32xf32>,
    %c4_i32_104 = arith.constant 4 : i32
    %312 = arith.index_cast %c4_i32_104 : i32 to index
    %c0_105 = arith.constant 0 : index
    %c0_106 = arith.constant 0 : index
    %313 = vector.load %arg11[%312, %c0_105, %c0_106] : memref<8x2x128xf32, #tpu.memory_space<vmem>>, vector<1x2x128xf32>
    %314 = vector.shape_cast %313 : vector<1x2x128xf32> to vector<2x128xf32>
    %cst_107 = arith.constant dense<0.000000e+00> : vector<2x128xf32>
    %315 = tpu.matmul %307, %207, %cst_107 {dimension_numbers = #tpu.dot_dimension_numbers<[1], [0], [0], [1], [0, 0, 1, 1], [], []>} : vector<2x32xf32>, vector<32x128xf32>, vector<2x128xf32> -> vector<2x128xf32>
    %316 = arith.addf %314, %315 : vector<2x128xf32>
    %317 = arith.negf %316 : vector<2x128xf32>
    %318 = math.exp %317 : vector<2x128xf32>
    %cst_108 = arith.constant 1.000000e+00 : f32
    %319 = vector.broadcast %cst_108 : f32 to vector<2x128xf32>
    %320 = arith.addf %319, %318 : vector<2x128xf32>
    %321 = arith.divf %319, %320 : vector<2x128xf32>
    %322 = vector.extract_strided_slice %321 {offsets = [0, 0], sizes = [2, 32], strides = [1, 1]} : vector<2x128xf32> to vector<2x32xf32>
    %323 = vector.extract_strided_slice %321 {offsets = [0, 32], sizes = [2, 32], strides = [1, 1]} : vector<2x128xf32> to vector<2x32xf32>
    %324 = vector.extract_strided_slice %316 {offsets = [0, 64], sizes = [2, 32], strides = [1, 1]} : vector<2x128xf32> to vector<2x32xf32>
    %325 = math.tanh %324 : vector<2x32xf32>
    %326 = vector.extract_strided_slice %321 {offsets = [0, 96], sizes = [2, 32], strides = [1, 1]} : vector<2x128xf32> to vector<2x32xf32>
    %327 = arith.mulf %323, %305 : vector<2x32xf32>
    %328 = arith.mulf %322, %325 : vector<2x32xf32>
    %329 = arith.addf %327, %328 : vector<2x32xf32>
    %330 = math.tanh %329 : vector<2x32xf32>
    %331 = arith.mulf %326, %330 : vector<2x32xf32>
    %332 = arith.index_cast %c4_i32_104 : i32 to index
    %c0_109 = arith.constant 0 : index
    %c0_110 = arith.constant 0 : index
    %333 = vector.load %arg12[%332, %c0_109, %c0_110] : memref<8x2x32xf32, #tpu.memory_space<vmem>>, vector<1x2x32xf32>
    %334 = vector.shape_cast %333 : vector<1x2x32xf32> to vector<2x32xf32>
    %335 = vector.shape_cast %331 : vector<2x32xf32> to vector<1x2x32xf32>
    tpu.vector_store %arg12[%332, %c0_109, %c0_110], %335 {strides = array<i32>} : memref<8x2x32xf32, #tpu.memory_space<vmem>>, vector<1x2x32xf32>,
    %c5_i32_111 = arith.constant 5 : i32
    %336 = arith.index_cast %c5_i32_111 : i32 to index
    %c0_112 = arith.constant 0 : index
    %c0_113 = arith.constant 0 : index
    %337 = vector.load %arg11[%336, %c0_112, %c0_113] : memref<8x2x128xf32, #tpu.memory_space<vmem>>, vector<1x2x128xf32>
    %338 = vector.shape_cast %337 : vector<1x2x128xf32> to vector<2x128xf32>
    %cst_114 = arith.constant dense<0.000000e+00> : vector<2x128xf32>
    %339 = tpu.matmul %331, %207, %cst_114 {dimension_numbers = #tpu.dot_dimension_numbers<[1], [0], [0], [1], [0, 0, 1, 1], [], []>} : vector<2x32xf32>, vector<32x128xf32>, vector<2x128xf32> -> vector<2x128xf32>
    %340 = arith.addf %338, %339 : vector<2x128xf32>
    %341 = arith.negf %340 : vector<2x128xf32>
    %342 = math.exp %341 : vector<2x128xf32>
    %cst_115 = arith.constant 1.000000e+00 : f32
    %343 = vector.broadcast %cst_115 : f32 to vector<2x128xf32>
    %344 = arith.addf %343, %342 : vector<2x128xf32>
    %345 = arith.divf %343, %344 : vector<2x128xf32>
    %346 = vector.extract_strided_slice %345 {offsets = [0, 0], sizes = [2, 32], strides = [1, 1]} : vector<2x128xf32> to vector<2x32xf32>
    %347 = vector.extract_strided_slice %345 {offsets = [0, 32], sizes = [2, 32], strides = [1, 1]} : vector<2x128xf32> to vector<2x32xf32>
    %348 = vector.extract_strided_slice %340 {offsets = [0, 64], sizes = [2, 32], strides = [1, 1]} : vector<2x128xf32> to vector<2x32xf32>
    %349 = math.tanh %348 : vector<2x32xf32>
    %350 = vector.extract_strided_slice %345 {offsets = [0, 96], sizes = [2, 32], strides = [1, 1]} : vector<2x128xf32> to vector<2x32xf32>
    %351 = arith.mulf %347, %329 : vector<2x32xf32>
    %352 = arith.mulf %346, %349 : vector<2x32xf32>
    %353 = arith.addf %351, %352 : vector<2x32xf32>
    %354 = math.tanh %353 : vector<2x32xf32>
    %355 = arith.mulf %350, %354 : vector<2x32xf32>
    %356 = arith.index_cast %c5_i32_111 : i32 to index
    %c0_116 = arith.constant 0 : index
    %c0_117 = arith.constant 0 : index
    %357 = vector.load %arg12[%356, %c0_116, %c0_117] : memref<8x2x32xf32, #tpu.memory_space<vmem>>, vector<1x2x32xf32>
    %358 = vector.shape_cast %357 : vector<1x2x32xf32> to vector<2x32xf32>
    %359 = vector.shape_cast %355 : vector<2x32xf32> to vector<1x2x32xf32>
    tpu.vector_store %arg12[%356, %c0_116, %c0_117], %359 {strides = array<i32>} : memref<8x2x32xf32, #tpu.memory_space<vmem>>, vector<1x2x32xf32>,
    %c6_i32_118 = arith.constant 6 : i32
    %360 = arith.index_cast %c6_i32_118 : i32 to index
    %c0_119 = arith.constant 0 : index
    %c0_120 = arith.constant 0 : index
    %361 = vector.load %arg11[%360, %c0_119, %c0_120] : memref<8x2x128xf32, #tpu.memory_space<vmem>>, vector<1x2x128xf32>
    %362 = vector.shape_cast %361 : vector<1x2x128xf32> to vector<2x128xf32>
    %cst_121 = arith.constant dense<0.000000e+00> : vector<2x128xf32>
    %363 = tpu.matmul %355, %207, %cst_121 {dimension_numbers = #tpu.dot_dimension_numbers<[1], [0], [0], [1], [0, 0, 1, 1], [], []>} : vector<2x32xf32>, vector<32x128xf32>, vector<2x128xf32> -> vector<2x128xf32>
    %364 = arith.addf %362, %363 : vector<2x128xf32>
    %365 = arith.negf %364 : vector<2x128xf32>
    %366 = math.exp %365 : vector<2x128xf32>
    %cst_122 = arith.constant 1.000000e+00 : f32
    %367 = vector.broadcast %cst_122 : f32 to vector<2x128xf32>
    %368 = arith.addf %367, %366 : vector<2x128xf32>
    %369 = arith.divf %367, %368 : vector<2x128xf32>
    %370 = vector.extract_strided_slice %369 {offsets = [0, 0], sizes = [2, 32], strides = [1, 1]} : vector<2x128xf32> to vector<2x32xf32>
    %371 = vector.extract_strided_slice %369 {offsets = [0, 32], sizes = [2, 32], strides = [1, 1]} : vector<2x128xf32> to vector<2x32xf32>
    %372 = vector.extract_strided_slice %364 {offsets = [0, 64], sizes = [2, 32], strides = [1, 1]} : vector<2x128xf32> to vector<2x32xf32>
    %373 = math.tanh %372 : vector<2x32xf32>
    %374 = vector.extract_strided_slice %369 {offsets = [0, 96], sizes = [2, 32], strides = [1, 1]} : vector<2x128xf32> to vector<2x32xf32>
    %375 = arith.mulf %371, %353 : vector<2x32xf32>
    %376 = arith.mulf %370, %373 : vector<2x32xf32>
    %377 = arith.addf %375, %376 : vector<2x32xf32>
    %378 = math.tanh %377 : vector<2x32xf32>
    %379 = arith.mulf %374, %378 : vector<2x32xf32>
    %380 = arith.index_cast %c6_i32_118 : i32 to index
    %c0_123 = arith.constant 0 : index
    %c0_124 = arith.constant 0 : index
    %381 = vector.load %arg12[%380, %c0_123, %c0_124] : memref<8x2x32xf32, #tpu.memory_space<vmem>>, vector<1x2x32xf32>
    %382 = vector.shape_cast %381 : vector<1x2x32xf32> to vector<2x32xf32>
    %383 = vector.shape_cast %379 : vector<2x32xf32> to vector<1x2x32xf32>
    tpu.vector_store %arg12[%380, %c0_123, %c0_124], %383 {strides = array<i32>} : memref<8x2x32xf32, #tpu.memory_space<vmem>>, vector<1x2x32xf32>,
    %c7_i32_125 = arith.constant 7 : i32
    %384 = arith.index_cast %c7_i32_125 : i32 to index
    %c0_126 = arith.constant 0 : index
    %c0_127 = arith.constant 0 : index
    %385 = vector.load %arg11[%384, %c0_126, %c0_127] : memref<8x2x128xf32, #tpu.memory_space<vmem>>, vector<1x2x128xf32>
    %386 = vector.shape_cast %385 : vector<1x2x128xf32> to vector<2x128xf32>
    %cst_128 = arith.constant dense<0.000000e+00> : vector<2x128xf32>
    %387 = tpu.matmul %379, %207, %cst_128 {dimension_numbers = #tpu.dot_dimension_numbers<[1], [0], [0], [1], [0, 0, 1, 1], [], []>} : vector<2x32xf32>, vector<32x128xf32>, vector<2x128xf32> -> vector<2x128xf32>
    %388 = arith.addf %386, %387 : vector<2x128xf32>
    %389 = arith.negf %388 : vector<2x128xf32>
    %390 = math.exp %389 : vector<2x128xf32>
    %cst_129 = arith.constant 1.000000e+00 : f32
    %391 = vector.broadcast %cst_129 : f32 to vector<2x128xf32>
    %392 = arith.addf %391, %390 : vector<2x128xf32>
    %393 = arith.divf %391, %392 : vector<2x128xf32>
    %394 = vector.extract_strided_slice %393 {offsets = [0, 0], sizes = [2, 32], strides = [1, 1]} : vector<2x128xf32> to vector<2x32xf32>
    %395 = vector.extract_strided_slice %393 {offsets = [0, 32], sizes = [2, 32], strides = [1, 1]} : vector<2x128xf32> to vector<2x32xf32>
    %396 = vector.extract_strided_slice %388 {offsets = [0, 64], sizes = [2, 32], strides = [1, 1]} : vector<2x128xf32> to vector<2x32xf32>
    %397 = math.tanh %396 : vector<2x32xf32>
    %398 = vector.extract_strided_slice %393 {offsets = [0, 96], sizes = [2, 32], strides = [1, 1]} : vector<2x128xf32> to vector<2x32xf32>
    %399 = arith.mulf %395, %377 : vector<2x32xf32>
    %400 = arith.mulf %394, %397 : vector<2x32xf32>
    %401 = arith.addf %399, %400 : vector<2x32xf32>
    %402 = math.tanh %401 : vector<2x32xf32>
    %403 = arith.mulf %398, %402 : vector<2x32xf32>
    %404 = arith.index_cast %c7_i32_125 : i32 to index
    %c0_130 = arith.constant 0 : index
    %c0_131 = arith.constant 0 : index
    %405 = vector.load %arg12[%404, %c0_130, %c0_131] : memref<8x2x32xf32, #tpu.memory_space<vmem>>, vector<1x2x32xf32>
    %406 = vector.shape_cast %405 : vector<1x2x32xf32> to vector<2x32xf32>
    %407 = vector.shape_cast %403 : vector<2x32xf32> to vector<1x2x32xf32>
    tpu.vector_store %arg12[%404, %c0_130, %c0_131], %407 {strides = array<i32>} : memref<8x2x32xf32, #tpu.memory_space<vmem>>, vector<1x2x32xf32>,
    %c8_i32_132 = arith.constant 8 : i32
    %c0_133 = arith.constant 0 : index
    %c0_134 = arith.constant 0 : index
    %c0_135 = arith.constant 0 : index
    %408 = vector.load %arg12[%c0_133, %c0_134, %c0_135] : memref<8x2x32xf32, #tpu.memory_space<vmem>>, vector<8x2x32xf32>
    %409 = vector.shape_cast %408 : vector<8x2x32xf32> to vector<16x32xf32>
    %c0_136 = arith.constant 0 : index
    %c0_137 = arith.constant 0 : index
    %410 = vector.load %arg8[%c0_136, %c0_137] : memref<32x128xf32, #tpu.memory_space<vmem>>, vector<32x128xf32>
    %cst_138 = arith.constant dense<0.000000e+00> : vector<16x128xf32>
    %411 = tpu.matmul %409, %410, %cst_138 {dimension_numbers = #tpu.dot_dimension_numbers<[1], [0], [0], [1], [0, 0, 1, 1], [], []>} : vector<16x32xf32>, vector<32x128xf32>, vector<16x128xf32> -> vector<16x128xf32>
    %c0_139 = arith.constant 0 : index
    %c0_140 = arith.constant 0 : index
    %412 = vector.load %arg9[%c0_139, %c0_140] : memref<1x128xf32, #tpu.memory_space<vmem>>, vector<1x128xf32>
    %413 = vector.broadcast %412 : vector<1x128xf32> to vector<16x128xf32>
    %414 = arith.addf %411, %413 : vector<16x128xf32>
    %415 = vector.shape_cast %414 : vector<16x128xf32> to vector<8x2x128xf32>
    %c0_141 = arith.constant 0 : index
    %c0_142 = arith.constant 0 : index
    %c0_143 = arith.constant 0 : index
    %416 = vector.load %arg10[%c0_141, %c0_142, %c0_143] : memref<8x2x128xf32, #tpu.memory_space<vmem>>, vector<8x2x128xf32>
    tpu.vector_store %arg10[%c0_141, %c0_142, %c0_143], %415 {strides = array<i32>} : memref<8x2x128xf32, #tpu.memory_space<vmem>>, vector<8x2x128xf32>,
    return
  }
  func.func @transform_0(%arg0: i32) -> (i32, i32, i32) {
    %c0_i32 = arith.constant 0 : i32
    %c0_i32_0 = arith.constant 0 : i32
    %c0_i32_1 = arith.constant 0 : i32
    return %c0_i32, %arg0, %c0_i32_0 : i32, i32, i32
  }
  func.func @transform_1(%arg0: i32) -> (i32, i32) {
    %c0_i32 = arith.constant 0 : i32
    %c0_i32_0 = arith.constant 0 : i32
    %c0_i32_1 = arith.constant 0 : i32
    return %c0_i32, %c0_i32_0 : i32, i32
  }
  func.func @transform_2(%arg0: i32) -> (i32, i32) {
    %c0_i32 = arith.constant 0 : i32
    %c0_i32_0 = arith.constant 0 : i32
    %c0_i32_1 = arith.constant 0 : i32
    return %c0_i32, %c0_i32_0 : i32, i32
  }
  func.func @transform_3(%arg0: i32) -> (i32, i32) {
    %c0_i32 = arith.constant 0 : i32
    %c0_i32_0 = arith.constant 0 : i32
    %c0_i32_1 = arith.constant 0 : i32
    return %c0_i32, %c0_i32_0 : i32, i32
  }
  func.func @transform_4(%arg0: i32) -> (i32, i32) {
    %c0_i32 = arith.constant 0 : i32
    %c0_i32_0 = arith.constant 0 : i32
    %c0_i32_1 = arith.constant 0 : i32
    return %c0_i32, %c0_i32_0 : i32, i32
  }
  func.func @transform_5(%arg0: i32) -> (i32, i32) {
    %c0_i32 = arith.constant 0 : i32
    %c0_i32_0 = arith.constant 0 : i32
    %c0_i32_1 = arith.constant 0 : i32
    return %c0_i32, %c0_i32_0 : i32, i32
  }
  func.func @transform_6(%arg0: i32) -> (i32, i32) {
    %c0_i32 = arith.constant 0 : i32
    %c0_i32_0 = arith.constant 0 : i32
    %c0_i32_1 = arith.constant 0 : i32
    return %c0_i32, %c0_i32_0 : i32, i32
  }
  func.func @transform_7(%arg0: i32) -> (i32, i32) {
    %c0_i32 = arith.constant 0 : i32
    %c0_i32_0 = arith.constant 0 : i32
    %c0_i32_1 = arith.constant 0 : i32
    return %c0_i32, %c0_i32_0 : i32, i32
  }
  func.func @transform_8(%arg0: i32) -> (i32, i32) {
    %c0_i32 = arith.constant 0 : i32
    %c0_i32_0 = arith.constant 0 : i32
    %c0_i32_1 = arith.constant 0 : i32
    return %c0_i32, %c0_i32_0 : i32, i32
  }
  func.func @transform_9(%arg0: i32) -> (i32, i32, i32) {
    %c0_i32 = arith.constant 0 : i32
    %c0_i32_0 = arith.constant 0 : i32
    %c0_i32_1 = arith.constant 0 : i32
    return %c0_i32, %arg0, %c0_i32_0 : i32, i32, i32
  }
}

</mosaic_0001>

<llo_original>
// kernel: validate_lstm_quantile_forward.1
$region0: #{validate_lstm_quantile_forward.1}
  #allocation0 [shape = 'u32[]', space=smem, size = 0x4, offset = 0x4, fixed_abs, tag = 'smem constant byte address 0x4 - core index']
  #allocation1 [shape = 'u32[144,128]{1,0:T(1,128)}', space=vmem, size = 0x12000, scoped, tag = 'internal scratch']
  #allocation2 [shape = 'f32[8,2,128]{2,1,0:T(2,128)}', space=vmem, size = 0x2000, scoped, tag = 'scratch operand']
  #allocation3 [shape = 'f32[8,2,32]{2,1,0:T(2,128)}', space=vmem, size = 0x2000, scoped, tag = 'scratch operand']
  %s0 = inlined_call_operand.vmem [shape: f32[8,2,4], index: 0, kind: input, shape index: {}]
  %s1 = inlined_call_operand.vmem [shape: f32[4,128], index: 1, kind: input, shape index: {}]
  %s2 = inlined_call_operand.vmem [shape: f32[32,128], index: 2, kind: input, shape index: {}]
  %s3 = inlined_call_operand.vmem [shape: f32[1,128], index: 3, kind: input, shape index: {}]
  %s4 = inlined_call_operand.vmem [shape: f32[32,128], index: 4, kind: input, shape index: {}]
  %s5 = inlined_call_operand.vmem [shape: f32[32,128], index: 5, kind: input, shape index: {}]
  %s6 = inlined_call_operand.vmem [shape: f32[1,128], index: 6, kind: input, shape index: {}]
  %s7 = inlined_call_operand.vmem [shape: f32[32,128], index: 7, kind: input, shape index: {}]
  %s8 = inlined_call_operand.vmem [shape: f32[1,128], index: 8, kind: input, shape index: {}]
  %s9 = inlined_call_operand.vmem [shape: f32[8,2,128], index: 9, kind: output, shape index: {}]
  %s10 = sld [smem:[#allocation0]]
  $region46: #{validate_lstm_quantile_forward.1} parent=0
    _
  %s12 = ssub.s32 1, %s10
  %s13 = scalar_select 0, %s12, %s10
  // Predicated region
  $region2: #{validate_lstm_quantile_forward.1} parent=0 // pred_check
    _
  $region3: #{validate_lstm_quantile_forward.1} parent=0 // pred_check_branch
    %15 = sbr.rel (0) target = $region5
  $region4: #{validate_lstm_quantile_forward.1} parent=0 // pred_region
    _
  $region5: #{validate_lstm_quantile_forward.1} parent=0 // pred_fallthru
    _
  // Predicated region
  $region6: #{validate_lstm_quantile_forward.1} parent=0 // pred_check
    _
  $region7: #{validate_lstm_quantile_forward.1} parent=0 // pred_check_branch
    %17 = sbr.rel (0) target = $region9
  $region8: #{validate_lstm_quantile_forward.1} parent=0 // pred_region
    _
  $region9: #{validate_lstm_quantile_forward.1} parent=0 // pred_fallthru
    _
  // Predicated region
  $region10: #{validate_lstm_quantile_forward.1} parent=0 // pred_check
    _
  $region11: #{validate_lstm_quantile_forward.1} parent=0 // pred_check_branch
    %19 = sbr.rel (0) target = $region13
  $region12: #{validate_lstm_quantile_forward.1} parent=0 // pred_region
    _
  $region13: #{validate_lstm_quantile_forward.1} parent=0 // pred_fallthru
    _
  // Predicated region
  $region14: #{validate_lstm_quantile_forward.1} parent=0 // pred_check
    _
  $region15: #{validate_lstm_quantile_forward.1} parent=0 // pred_check_branch
    %21 = sbr.rel (0) target = $region17
  $region16: #{validate_lstm_quantile_forward.1} parent=0 // pred_region
    _
  $region17: #{validate_lstm_quantile_forward.1} parent=0 // pred_fallthru
    _
  // Predicated region
  $region18: #{validate_lstm_quantile_forward.1} parent=0 // pred_check
    _
  $region19: #{validate_lstm_quantile_forward.1} parent=0 // pred_check_branch
    %23 = sbr.rel (0) target = $region21
  $region20: #{validate_lstm_quantile_forward.1} parent=0 // pred_region
    _
  $region21: #{validate_lstm_quantile_forward.1} parent=0 // pred_fallthru
    _
  // Predicated region
  $region22: #{validate_lstm_quantile_forward.1} parent=0 // pred_check
    _
  $region23: #{validate_lstm_quantile_forward.1} parent=0 // pred_check_branch
    %25 = sbr.rel (0) target = $region25
  $region24: #{validate_lstm_quantile_forward.1} parent=0 // pred_region
    _
  $region25: #{validate_lstm_quantile_forward.1} parent=0 // pred_fallthru
    _
  // Predicated region
  $region26: #{validate_lstm_quantile_forward.1} parent=0 // pred_check
    _
  $region27: #{validate_lstm_quantile_forward.1} parent=0 // pred_check_branch
    %27 = sbr.rel (0) target = $region29
  $region28: #{validate_lstm_quantile_forward.1} parent=0 // pred_region
    _
  $region29: #{validate_lstm_quantile_forward.1} parent=0 // pred_fallthru
    _
  // Predicated region
  $region30: #{validate_lstm_quantile_forward.1} parent=0 // pred_check
    _
  $region31: #{validate_lstm_quantile_forward.1} parent=0 // pred_check_branch
    %29 = sbr.rel (0) target = $region33
  $region32: #{validate_lstm_quantile_forward.1} parent=0 // pred_region
    _
  $region33: #{validate_lstm_quantile_forward.1} parent=0 // pred_fallthru
    _
  // Predicated region
  $region34: #{validate_lstm_quantile_forward.1} parent=0 // pred_check
    _
  $region35: #{validate_lstm_quantile_forward.1} parent=0 // pred_check_branch
    %31 = sbr.rel (0) target = $region37
  $region36: #{validate_lstm_quantile_forward.1} parent=0 // pred_region
    _
  $region37: #{validate_lstm_quantile_forward.1} parent=0 // pred_fallthru
    _
  %v32 = vld [vmem:[%s0] sm:$0x3]
  %v33 = vld [vmem:[%s0 + $0x2] sm:$0x3]
  %v34 = vld [vmem:[%s0 + $0x4] sm:$0x3]
  %v35 = vld [vmem:[%s0 + $0x6] sm:$0x3]
  %v36 = vld [vmem:[%s0 + $0x8] sm:$0x3]
  %v37 = vld [vmem:[%s0 + $0xa] sm:$0x3]
  %v38 = vld [vmem:[%s0 + $0xc] sm:$0x3]
  %v39 = vld [vmem:[%s0 + $0xe] sm:$0x3]
  %v40 = vld [vmem:[%s1] sm:$0xf]
  %v41 = vld [vmem:[%s2] sm:$0xff]
  %v42 = vld [vmem:[%s2 + $0x8] sm:$0xff]
  %v43 = vld [vmem:[%s2 + $0x10] sm:$0xff]
  %v44 = vld [vmem:[%s2 + $0x18] sm:$0xff]
  %v45 = vld [vmem:[%s3] sm:$0x1]
  %v47 = vlaneseq
  %v48 = vshrl.u32 %v47, 7
  %v49 = vsub.s32 0, %v48
  %v50 = vrot.slane %v45, %v49
  %v60 = vcombine.low %v32, %v33
  %v61 = vcombine.low %v34, %v35
  %v63 = vunpack.c.l.s4 1983009808
  %v64 = vunpack.c.0.s8 %v63
  %v65 = vlaneseq
  %v66 = vshrl.u32 %v65, 7
  %v67 = vsub.s32 %v64, %v66
  %v68 = vrot.slane %v60, %v67
  %v70 = vunpack.c.l.s4 1983009808
  %v71 = vunpack.c.0.s8 %v70
  %v72 = vlaneseq
  %v73 = vshrl.u32 %v72, 7
  %v74 = vsub.s32 %v71, %v73
  %v75 = vrot.slane %v61, %v74
  %v76 = vcombine.low %v68, %v75
  %v77 = vcombine.low %v36, %v37
  %v78 = vcombine.low %v38, %v39
  %v80 = vunpack.c.l.s4 1983009808
  %v81 = vunpack.c.0.s8 %v80
  %v82 = vlaneseq
  %v83 = vshrl.u32 %v82, 7
  %v84 = vsub.s32 %v81, %v83
  %v85 = vrot.slane %v77, %v84
  %v87 = vunpack.c.l.s4 1983009808
  %v88 = vunpack.c.0.s8 %v87
  %v89 = vlaneseq
  %v90 = vshrl.u32 %v89, 7
  %v91 = vsub.s32 %v88, %v90
  %v92 = vrot.slane %v78, %v91
  %v93 = vcombine.low %v85, %v92
  %vm94 = vcmask 31744
  %v95 = vsel %vm94, %v76, 0
  %v97 = vsel %vm94, %v93, 0
  %vm99 = vcmask 1043456
  %v101 = vsel %vm99, %v40, 0
  %103 = vmatprep.subr.mxu0 0.0
  %104 = vmatpush1.msra.mxu0 %v101
  %105 = vmatprep.subr.mxu0 0.0
  %106 = vmatpush1.msra.mxu0 0.0
  %107 = vmatprep.subr.mxu0 0.0
  %108 = vmatpush1.msra.mxu0 0.0
  %109 = vmatprep.subr.mxu0 0.0
  %110 = vmatpush1.msra.mxu0 0.0
  %111 = vmatprep.subr.mxu0 0.0
  %112 = vmatpush1.msra.mxu0 0.0
  %113 = vmatprep.subr.mxu0 0.0
  %114 = vmatpush1.msra.mxu0 0.0
  %115 = vmatprep.subr.mxu0 0.0
  %116 = vmatpush1.msra.mxu0 0.0
  %117 = vmatprep.subr.mxu0 0.0
  %118 = vmatpush1.msra.mxu0 0.0
  %119 = vmatprep.subr.mxu0 0.0
  %120 = vmatpush1.msra.mxu0 0.0
  %121 = vmatprep.subr.mxu0 0.0
  %122 = vmatpush1.msra.mxu0 0.0
  %123 = vmatprep.subr.mxu0 0.0
  %124 = vmatpush1.msra.mxu0 0.0
  %125 = vmatprep.subr.mxu0 0.0
  %126 = vmatpush1.msra.mxu0 0.0
  %127 = vmatprep.subr.mxu0 0.0
  %128 = vmatpush1.msra.mxu0 0.0
  %129 = vmatprep.subr.mxu0 0.0
  %130 = vmatpush1.msra.mxu0 0.0
  %131 = vmatprep.subr.mxu0 0.0
  %132 = vmatpush1.msra.mxu0 0.0
  %133 = vmatprep.subr.mxu0 0.0
  %134 = vmatpush1.msra.mxu0 0.0
  %135 = vmatprep.subr.mxu0 0.0
  %136 = vmatpush1.msra.mxu0 0.0
  %137 = vmatprep.subr.mxu0 0.0
  %138 = vmatpush1.msra.mxu0 0.0
  %139 = vmatprep.subr.mxu0 0.0
  %140 = vmatpush1.msra.mxu0 0.0
  %141 = vmatprep.subr.mxu0 0.0
  %142 = vmatpush1.msra.mxu0 0.0
  %143 = vmatprep.subr.mxu0 0.0
  %144 = vmatpush1.msra.mxu0 0.0
  %145 = vmatprep.subr.mxu0 0.0
  %146 = vmatpush1.msra.mxu0 0.0
  %147 = vmatprep.subr.mxu0 0.0
  %148 = vmatpush1.msra.mxu0 0.0
  %149 = vmatprep.subr.mxu0 0.0
  %150 = vmatpush1.msra.mxu0 0.0
  %151 = vmatprep.subr.mxu0 0.0
  %152 = vmatpush1.msra.mxu0 0.0
  %153 = vmatprep.subr.mxu0 0.0
  %154 = vmatpush1.msra.mxu0 0.0
  %155 = vmatprep.subr.mxu0 0.0
  %156 = vmatpush1.msra.mxu0 0.0
  %157 = vmatprep.subr.mxu0 0.0
  %158 = vmatpush1.msra.mxu0 0.0
  %159 = vmatprep.subr.mxu0 0.0
  %160 = vmatpush1.msra.mxu0 0.0
  %161 = vmatprep.subr.mxu0 0.0
  %162 = vmatpush1.msra.mxu0 0.0
  %163 = vmatprep.subr.mxu0 0.0
  %164 = vmatpush1.msra.mxu0 0.0
  %165 = vmatprep.subr.mxu0 0.0
  %166 = vmatpush1.msra.mxu0 0.0
  %167 = vmatprep.mubr.f32.mxu0 0.0
  %168 = vmatmul.mubr.f32.gmra.mrb[0].mxu0 %v95
  %v169 = vpop.f32.mrb[0].mxu0
  %v170 = vadd.f32 %v50, %v169
  %v171 = vpop.f32.mrb[0].mxu0
  %172 = vmatprep.mubr.f32.mxu0 0.0
  %173 = vmatmul.mubr.f32.gmra.mrb[0].mxu0 %v97
  %v174 = vpop.f32.mrb[0].mxu0
  %v175 = vadd.f32 %v50, %v174
  %v176 = vpop.f32.mrb[0].mxu0
  %177 = vdwg.mxu0
  %v180 = vcombine.high %v170, %v170
  %v182 = vunpack.c.l.s4 1983009808
  %v183 = vunpack.c.0.s8 %v182
  %v184 = vlaneseq
  %v185 = vshrl.u32 %v184, 7
  %v186 = vsub.s32 %v183, %v185
  %v187 = vrot.slane %v170, %v186
  %v189 = vunpack.c.l.s4 1983009808
  %v190 = vunpack.c.0.s8 %v189
  %v191 = vlaneseq
  %v192 = vshrl.u32 %v191, 7
  %v193 = vsub.s32 %v190, %v192
  %v194 = vrot.slane %v180, %v193
  %v195 = vcombine.high %v187, %v187
  %v196 = vcombine.high %v194, %v194
  %v197 = vcombine.high %v175, %v175
  %v199 = vunpack.c.l.s4 1983009808
  %v200 = vunpack.c.0.s8 %v199
  %v201 = vlaneseq
  %v202 = vshrl.u32 %v201, 7
  %v203 = vsub.s32 %v200, %v202
  %v204 = vrot.slane %v175, %v203
  %v206 = vunpack.c.l.s4 1983009808
  %v207 = vunpack.c.0.s8 %v206
  %v208 = vlaneseq
  %v209 = vshrl.u32 %v208, 7
  %v210 = vsub.s32 %v207, %v209
  %v211 = vrot.slane %v197, %v210
  %v212 = vcombine.high %v204, %v204
  %v213 = vcombine.high %v211, %v211
  %222 = vst [vmem:[#allocation2] sm:$0x3] %v187
  %223 = vst [vmem:[#allocation2 + $0x2] sm:$0x3] %v195
  %224 = vst [vmem:[#allocation2 + $0x4] sm:$0x3] %v194
  %225 = vst [vmem:[#allocation2 + $0x6] sm:$0x3] %v196
  %226 = vst [vmem:[#allocation2 + $0x8] sm:$0x3] %v204
  %227 = vst [vmem:[#allocation2 + $0xa] sm:$0x3] %v212
  %228 = vst [vmem:[#allocation2 + $0xc] sm:$0x3] %v211
  %229 = vst [vmem:[#allocation2 + $0xe] sm:$0x3] %v213
  %v230 = vld [vmem:[#allocation2] sm:$0x3]
  %vm231 = vcmask 261120
  %v233 = vsel %vm231, 0.0, 0
  %235 = vmatprep.subr.mxu0 0.0
  %236 = vmatpush1.msra.mxu0 %v41
  %237 = vmatprep.subr.mxu0 0.0
  %238 = vmatpush1.msra.mxu0 %v42
  %239 = vmatprep.subr.mxu0 0.0
  %240 = vmatpush1.msra.mxu0 %v43
  %241 = vmatprep.subr.mxu0 0.0
  %242 = vmatpush1.msra.mxu0 %v44
  %243 = vmatprep.subr.mxu0 0.0
  %244 = vmatpush1.msra.mxu0 0.0
  %245 = vmatprep.subr.mxu0 0.0
  %246 = vmatpush1.msra.mxu0 0.0
  %247 = vmatprep.subr.mxu0 0.0
  %248 = vmatpush1.msra.mxu0 0.0
  %249 = vmatprep.subr.mxu0 0.0
  %250 = vmatpush1.msra.mxu0 0.0
  %251 = vmatprep.subr.mxu0 0.0
  %252 = vmatpush1.msra.mxu0 0.0
  %253 = vmatprep.subr.mxu0 0.0
  %254 = vmatpush1.msra.mxu0 0.0
  %255 = vmatprep.subr.mxu0 0.0
  %256 = vmatpush1.msra.mxu0 0.0
  %257 = vmatprep.subr.mxu0 0.0
  %258 = vmatpush1.msra.mxu0 0.0
  %259 = vmatprep.subr.mxu0 0.0
  %260 = vmatpush1.msra.mxu0 0.0
  %261 = vmatprep.subr.mxu0 0.0
  %262 = vmatpush1.msra.mxu0 0.0
  %263 = vmatprep.subr.mxu0 0.0
  %264 = vmatpush1.msra.mxu0 0.0
  %265 = vmatprep.subr.mxu0 0.0
  %266 = vmatpush1.msra.mxu0 0.0
  %267 = vmatprep.subr.mxu0 0.0
  %268 = vmatpush1.msra.mxu0 0.0
  %269 = vmatprep.subr.mxu0 0.0
  %270 = vmatpush1.msra.mxu0 0.0
  %271 = vmatprep.subr.mxu0 0.0
  %272 = vmatpush1.msra.mxu0 0.0
  %273 = vmatprep.subr.mxu0 0.0
  %274 = vmatpush1.msra.mxu0 0.0
  %275 = vmatprep.subr.mxu0 0.0
  %276 = vmatpush1.msra.mxu0 0.0
  %277 = vmatprep.subr.mxu0 0.0
  %278 = vmatpush1.msra.mxu0 0.0
  %279 = vmatprep.subr.mxu0 0.0
  %280 = vmatpush1.msra.mxu0 0.0
  %281 = vmatprep.subr.mxu0 0.0
  %282 = vmatpush1.msra.mxu0 0.0
  %283 = vmatprep.subr.mxu0 0.0
  %284 = vmatpush1.msra.mxu0 0.0
  %285 = vmatprep.subr.mxu0 0.0
  %286 = vmatpush1.msra.mxu0 0.0
  %287 = vmatprep.subr.mxu0 0.0
  %288 = vmatpush1.msra.mxu0 0.0
  %289 = vmatprep.subr.mxu0 0.0
  %290 = vmatpush1.msra.mxu0 0.0
  %291 = vmatprep.subr.mxu0 0.0
  %292 = vmatpush1.msra.mxu0 0.0
  %293 = vmatprep.subr.mxu0 0.0
  %294 = vmatpush1.msra.mxu0 0.0
  %295 = vmatprep.subr.mxu0 0.0
  %296 = vmatpush1.msra.mxu0 0.0
  %297 = vmatprep.subr.mxu0 0.0
  %298 = vmatpush1.msra.mxu0 0.0
  %299 = vmatprep.mubr.f32.mxu0 0.0
  %300 = vmatmul.mubr.f32.gmra.mrb[0].mxu0 %v233
  %v301 = vpop.f32.mrb[0].mxu0
  %v302 = vadd.f32 0.0, %v301
  %v303 = vpop.f32.mrb[0].mxu0
  %304 = vdwg.mxu0
  %v305 = vadd.f32 %v230, %v302
  %v306 = vxor.u32 %v305, 2147483648
  %v307 = vmul.f32 %v306, 1.442695
  %v308 = vpow.pop %v307
  %v309 = vadd.f32 %v308, 1.0
  %v310 = vrcp.pop %v309
  %v311 = vmul.f32 1.0, %v310
  %v312 = vtanh.pop %v305
  %v313 = vmul.f32 %v311, 0.0
  %315 = vrot.lane.b32.xlu0 %v312, 64
  %v316 = vpop.permute.xlu0 %315
  %v318 = vmul.f32 %v311, %v316
  %320 = vrot.lane.b32.xlu0 %v318, 32
  %v321 = vpop.permute.xlu0 %320
  %v323 = vadd.f32 %v313, %v321
  %v324 = vtanh.pop %v323
  %326 = vrot.lane.b32.xlu0 %v324, 64
  %v327 = vpop.permute.xlu0 %326
  %v329 = vmul.f32 %v311, %v327
  %331 = vrot.lane.b32.xlu0 %v329, 32
  %v332 = vpop.permute.xlu0 %331
  %vm334 = vcmask 254976
  %335 = vst.msk [vmem:[#allocation3] sm:$0x3] %vm334, %v332
  %s336 = scalar_lea.vmem [#allocation2], 2
  %v337 = vld [vmem:[%s336] sm:$0x3]
  %v338 = vsel %vm231, %v332, 0
  %340 = vmatprep.subr.mxu0 0.0
  %341 = vmatpush1.msra.mxu0 %v41
  %342 = vmatprep.subr.mxu0 0.0
  %343 = vmatpush1.msra.mxu0 %v42
  %344 = vmatprep.subr.mxu0 0.0
  %345 = vmatpush1.msra.mxu0 %v43
  %346 = vmatprep.subr.mxu0 0.0
  %347 = vmatpush1.msra.mxu0 %v44
  %348 = vmatprep.subr.mxu0 0.0
  %349 = vmatpush1.msra.mxu0 0.0
  %350 = vmatprep.subr.mxu0 0.0
  %351 = vmatpush1.msra.mxu0 0.0
  %352 = vmatprep.subr.mxu0 0.0
  %353 = vmatpush1.msra.mxu0 0.0
  %354 = vmatprep.subr.mxu0 0.0
  %355 = vmatpush1.msra.mxu0 0.0
  %356 = vmatprep.subr.mxu0 0.0
  %357 = vmatpush1.msra.mxu0 0.0
  %358 = vmatprep.subr.mxu0 0.0
  %359 = vmatpush1.msra.mxu0 0.0
  %360 = vmatprep.subr.mxu0 0.0
  %361 = vmatpush1.msra.mxu0 0.0
  %362 = vmatprep.subr.mxu0 0.0
  %363 = vmatpush1.msra.mxu0 0.0
  %364 = vmatprep.subr.mxu0 0.0
  %365 = vmatpush1.msra.mxu0 0.0
  %366 = vmatprep.subr.mxu0 0.0
  %367 = vmatpush1.msra.mxu0 0.0
  %368 = vmatprep.subr.mxu0 0.0
  %369 = vmatpush1.msra.mxu0 0.0
  %370 = vmatprep.subr.mxu0 0.0
  %371 = vmatpush1.msra.mxu0 0.0
  %372 = vmatprep.subr.mxu0 0.0
  %373 = vmatpush1.msra.mxu0 0.0
  %374 = vmatprep.subr.mxu0 0.0
  %375 = vmatpush1.msra.mxu0 0.0
  %376 = vmatprep.subr.mxu0 0.0
  %377 = vmatpush1.msra.mxu0 0.0
  %378 = vmatprep.subr.mxu0 0.0
  %379 = vmatpush1.msra.mxu0 0.0
  %380 = vmatprep.subr.mxu0 0.0
  %381 = vmatpush1.msra.mxu0 0.0
  %382 = vmatprep.subr.mxu0 0.0
  %383 = vmatpush1.msra.mxu0 0.0
  %384 = vmatprep.subr.mxu0 0.0
  %385 = vmatpush1.msra.mxu0 0.0
  %386 = vmatprep.subr.mxu0 0.0
  %387 = vmatpush1.msra.mxu0 0.0
  %388 = vmatprep.subr.mxu0 0.0
  %389 = vmatpush1.msra.mxu0 0.0
  %390 = vmatprep.subr.mxu0 0.0
  %391 = vmatpush1.msra.mxu0 0.0
  %392 = vmatprep.subr.mxu0 0.0
  %393 = vmatpush1.msra.mxu0 0.0
  %394 = vmatprep.subr.mxu0 0.0
  %395 = vmatpush1.msra.mxu0 0.0
  %396 = vmatprep.subr.mxu0 0.0
  %397 = vmatpush1.msra.mxu0 0.0
  %398 = vmatprep.subr.mxu0 0.0
  %399 = vmatpush1.msra.mxu0 0.0
  %400 = vmatprep.subr.mxu0 0.0
  %401 = vmatpush1.msra.mxu0 0.0
  %402 = vmatprep.subr.mxu0 0.0
  %403 = vmatpush1.msra.mxu0 0.0
  %404 = vmatprep.mubr.f32.mxu0 0.0
  %405 = vmatmul.mubr.f32.gmra.mrb[0].mxu0 %v338
  %v406 = vpop.f32.mrb[0].mxu0
  %v407 = vadd.f32 0.0, %v406
  %v408 = vpop.f32.mrb[0].mxu0
  %409 = vdwg.mxu0
  %v410 = vadd.f32 %v337, %v407
  %v411 = vxor.u32 %v410, 2147483648
  %v412 = vmul.f32 %v411, 1.442695
  %v413 = vpow.pop %v412
  %v414 = vadd.f32 %v413, 1.0
  %v415 = vrcp.pop %v414
  %v416 = vmul.f32 1.0, %v415
  %v417 = vtanh.pop %v410
  %v418 = vmul.f32 %v416, %v323
  %420 = vrot.lane.b32.xlu0 %v417, 64
  %v421 = vpop.permute.xlu0 %420
  %v423 = vmul.f32 %v416, %v421
  %425 = vrot.lane.b32.xlu0 %v423, 32
  %v426 = vpop.permute.xlu0 %425
  %v428 = vadd.f32 %v418, %v426
  %v429 = vtanh.pop %v428
  %431 = vrot.lane.b32.xlu0 %v429, 64
  %v432 = vpop.permute.xlu0 %431
  %v434 = vmul.f32 %v416, %v432
  %436 = vrot.lane.b32.xlu0 %v434, 32
  %v437 = vpop.permute.xlu0 %436
  %s439 = scalar_lea.vmem [#allocation3], 2
  %440 = vst.msk [vmem:[%s439] sm:$0x3] %vm334, %v437
  %s441 = scalar_lea.vmem [#allocation2], 4
  %v442 = vld [vmem:[%s441] sm:$0x3]
  %v443 = vsel %vm231, %v437, 0
  %445 = vmatprep.subr.mxu0 0.0
  %446 = vmatpush1.msra.mxu0 %v41
  %447 = vmatprep.subr.mxu0 0.0
  %448 = vmatpush1.msra.mxu0 %v42
  %449 = vmatprep.subr.mxu0 0.0
  %450 = vmatpush1.msra.mxu0 %v43
  %451 = vmatprep.subr.mxu0 0.0
  %452 = vmatpush1.msra.mxu0 %v44
  %453 = vmatprep.subr.mxu0 0.0
  %454 = vmatpush1.msra.mxu0 0.0
  %455 = vmatprep.subr.mxu0 0.0
  %456 = vmatpush1.msra.mxu0 0.0
  %457 = vmatprep.subr.mxu0 0.0
  %458 = vmatpush1.msra.mxu0 0.0
  %459 = vmatprep.subr.mxu0 0.0
  %460 = vmatpush1.msra.mxu0 0.0
  %461 = vmatprep.subr.mxu0 0.0
  %462 = vmatpush1.msra.mxu0 0.0
  %463 = vmatprep.subr.mxu0 0.0
  %464 = vmatpush1.msra.mxu0 0.0
  %465 = vmatprep.subr.mxu0 0.0
  %466 = vmatpush1.msra.mxu0 0.0
  %467 = vmatprep.subr.mxu0 0.0
  %468 = vmatpush1.msra.mxu0 0.0
  %469 = vmatprep.subr.mxu0 0.0
  %470 = vmatpush1.msra.mxu0 0.0
  %471 = vmatprep.subr.mxu0 0.0
  %472 = vmatpush1.msra.mxu0 0.0
  %473 = vmatprep.subr.mxu0 0.0
  %474 = vmatpush1.msra.mxu0 0.0
  %475 = vmatprep.subr.mxu0 0.0
  %476 = vmatpush1.msra.mxu0 0.0
  %477 = vmatprep.subr.mxu0 0.0
  %478 = vmatpush1.msra.mxu0 0.0
  %479 = vmatprep.subr.mxu0 0.0
  %480 = vmatpush1.msra.mxu0 0.0
  %481 = vmatprep.subr.mxu0 0.0
  %482 = vmatpush1.msra.mxu0 0.0
  %483 = vmatprep.subr.mxu0 0.0
  %484 = vmatpush1.msra.mxu0 0.0
  %485 = vmatprep.subr.mxu0 0.0
  %486 = vmatpush1.msra.mxu0 0.0
  %487 = vmatprep.subr.mxu0 0.0
  %488 = vmatpush1.msra.mxu0 0.0
  %489 = vmatprep.subr.mxu0 0.0
  %490 = vmatpush1.msra.mxu0 0.0
  %491 = vmatprep.subr.mxu0 0.0
  %492 = vmatpush1.msra.mxu0 0.0
  %493 = vmatprep.subr.mxu0 0.0
  %494 = vmatpush1.msra.mxu0 0.0
  %495 = vmatprep.subr.mxu0 0.0
  %496 = vmatpush1.msra.mxu0 0.0
  %497 = vmatprep.subr.mxu0 0.0
  %498 = vmatpush1.msra.mxu0 0.0
  %499 = vmatprep.subr.mxu0 0.0
  %500 = vmatpush1.msra.mxu0 0.0
  %501 = vmatprep.subr.mxu0 0.0
  %502 = vmatpush1.msra.mxu0 0.0
  %503 = vmatprep.subr.mxu0 0.0
  %504 = vmatpush1.msra.mxu0 0.0
  %505 = vmatprep.subr.mxu0 0.0
  %506 = vmatpush1.msra.mxu0 0.0
  %507 = vmatprep.subr.mxu0 0.0
  %508 = vmatpush1.msra.mxu0 0.0
  %509 = vmatprep.mubr.f32.mxu0 0.0
  %510 = vmatmul.mubr.f32.gmra.mrb[0].mxu0 %v443
  %v511 = vpop.f32.mrb[0].mxu0
  %v512 = vadd.f32 0.0, %v511
  %v513 = vpop.f32.mrb[0].mxu0
  %514 = vdwg.mxu0
  %v515 = vadd.f32 %v442, %v512
  %v516 = vxor.u32 %v515, 2147483648
  %v517 = vmul.f32 %v516, 1.442695
  %v518 = vpow.pop %v517
  %v519 = vadd.f32 %v518, 1.0
  %v520 = vrcp.pop %v519
  %v521 = vmul.f32 1.0, %v520
  %v522 = vtanh.pop %v515
  %v523 = vmul.f32 %v521, %v428
  %525 = vrot.lane.b32.xlu0 %v522, 64
  %v526 = vpop.permute.xlu0 %525
  %v528 = vmul.f32 %v521, %v526
  %530 = vrot.lane.b32.xlu0 %v528, 32
  %v531 = vpop.permute.xlu0 %530
  %v533 = vadd.f32 %v523, %v531
  %v534 = vtanh.pop %v533
  %536 = vrot.lane.b32.xlu0 %v534, 64
  %v537 = vpop.permute.xlu0 %536
  %v539 = vmul.f32 %v521, %v537
  %541 = vrot.lane.b32.xlu0 %v539, 32
  %v542 = vpop.permute.xlu0 %541
  %s544 = scalar_lea.vmem [#allocation3], 4
  %545 = vst.msk [vmem:[%s544] sm:$0x3] %vm334, %v542
  %s546 = scalar_lea.vmem [#allocation2], 6
  %v547 = vld [vmem:[%s546] sm:$0x3]
  %v548 = vsel %vm231, %v542, 0
  %550 = vmatprep.subr.mxu0 0.0
  %551 = vmatpush1.msra.mxu0 %v41
  %552 = vmatprep.subr.mxu0 0.0
  %553 = vmatpush1.msra.mxu0 %v42
  %554 = vmatprep.subr.mxu0 0.0
  %555 = vmatpush1.msra.mxu0 %v43
  %556 = vmatprep.subr.mxu0 0.0
  %557 = vmatpush1.msra.mxu0 %v44
  %558 = vmatprep.subr.mxu0 0.0
  %559 = vmatpush1.msra.mxu0 0.0
  %560 = vmatprep.subr.mxu0 0.0
  %561 = vmatpush1.msra.mxu0 0.0
  %562 = vmatprep.subr.mxu0 0.0
  %563 = vmatpush1.msra.mxu0 0.0
  %564 = vmatprep.subr.mxu0 0.0
  %565 = vmatpush1.msra.mxu0 0.0
  %566 = vmatprep.subr.mxu0 0.0
  %567 = vmatpush1.msra.mxu0 0.0
  %568 = vmatprep.subr.mxu0 0.0
  %569 = vmatpush1.msra.mxu0 0.0
  %570 = vmatprep.subr.mxu0 0.0
  %571 = vmatpush1.msra.mxu0 0.0
  %572 = vmatprep.subr.mxu0 0.0
  %573 = vmatpush1.msra.mxu0 0.0
  %574 = vmatprep.subr.mxu0 0.0
  %575 = vmatpush1.msra.mxu0 0.0
  %576 = vmatprep.subr.mxu0 0.0
  %577 = vmatpush1.msra.mxu0 0.0
  %578 = vmatprep.subr.mxu0 0.0
  %579 = vmatpush1.msra.mxu0 0.0
  %580 = vmatprep.subr.mxu0 0.0
  %581 = vmatpush1.msra.mxu0 0.0
  %582 = vmatprep.subr.mxu0 0.0
  %583 = vmatpush1.msra.mxu0 0.0
  %584 = vmatprep.subr.mxu0 0.0
  %585 = vmatpush1.msra.mxu0 0.0
  %586 = vmatprep.subr.mxu0 0.0
  %587 = vmatpush1.msra.mxu0 0.0
  %588 = vmatprep.subr.mxu0 0.0
  %589 = vmatpush1.msra.mxu0 0.0
  %590 = vmatprep.subr.mxu0 0.0
  %591 = vmatpush1.msra.mxu0 0.0
  %592 = vmatprep.subr.mxu0 0.0
  %593 = vmatpush1.msra.mxu0 0.0
  %594 = vmatprep.subr.mxu0 0.0
  %595 = vmatpush1.msra.mxu0 0.0
  %596 = vmatprep.subr.mxu0 0.0
  %597 = vmatpush1.msra.mxu0 0.0
  %598 = vmatprep.subr.mxu0 0.0
  %599 = vmatpush1.msra.mxu0 0.0
  %600 = vmatprep.subr.mxu0 0.0
  %601 = vmatpush1.msra.mxu0 0.0
  %602 = vmatprep.subr.mxu0 0.0
  %603 = vmatpush1.msra.mxu0 0.0
  %604 = vmatprep.subr.mxu0 0.0
  %605 = vmatpush1.msra.mxu0 0.0
  %606 = vmatprep.subr.mxu0 0.0
  %607 = vmatpush1.msra.mxu0 0.0
  %608 = vmatprep.subr.mxu0 0.0
  %609 = vmatpush1.msra.mxu0 0.0
  %610 = vmatprep.subr.mxu0 0.0
  %611 = vmatpush1.msra.mxu0 0.0
  %612 = vmatprep.subr.mxu0 0.0
  %613 = vmatpush1.msra.mxu0 0.0
  %614 = vmatprep.mubr.f32.mxu0 0.0
  %615 = vmatmul.mubr.f32.gmra.mrb[0].mxu0 %v548
  %v616 = vpop.f32.mrb[0].mxu0
  %v617 = vadd.f32 0.0, %v616
  %v618 = vpop.f32.mrb[0].mxu0
  %619 = vdwg.mxu0
  %v620 = vadd.f32 %v547, %v617
  %v621 = vxor.u32 %v620, 2147483648
  %v622 = vmul.f32 %v621, 1.442695
  %v623 = vpow.pop %v622
  %v624 = vadd.f32 %v623, 1.0
  %v625 = vrcp.pop %v624
  %v626 = vmul.f32 1.0, %v625
  %v627 = vtanh.pop %v620
  %v628 = vmul.f32 %v626, %v533
  %630 = vrot.lane.b32.xlu0 %v627, 64
  %v631 = vpop.permute.xlu0 %630
  %v633 = vmul.f32 %v626, %v631
  %635 = vrot.lane.b32.xlu0 %v633, 32
  %v636 = vpop.permute.xlu0 %635
  %v638 = vadd.f32 %v628, %v636
  %v639 = vtanh.pop %v638
  %641 = vrot.lane.b32.xlu0 %v639, 64
  %v642 = vpop.permute.xlu0 %641
  %v644 = vmul.f32 %v626, %v642
  %646 = vrot.lane.b32.xlu0 %v644, 32
  %v647 = vpop.permute.xlu0 %646
  %s649 = scalar_lea.vmem [#allocation3], 6
  %650 = vst.msk [vmem:[%s649] sm:$0x3] %vm334, %v647
  %s651 = scalar_lea.vmem [#allocation2], 8
  %v652 = vld [vmem:[%s651] sm:$0x3]
  %v653 = vsel %vm231, %v647, 0
  %655 = vmatprep.subr.mxu0 0.0
  %656 = vmatpush1.msra.mxu0 %v41
  %657 = vmatprep.subr.mxu0 0.0
  %658 = vmatpush1.msra.mxu0 %v42
  %659 = vmatprep.subr.mxu0 0.0
  %660 = vmatpush1.msra.mxu0 %v43
  %661 = vmatprep.subr.mxu0 0.0
  %662 = vmatpush1.msra.mxu0 %v44
  %663 = vmatprep.subr.mxu0 0.0
  %664 = vmatpush1.msra.mxu0 0.0
  %665 = vmatprep.subr.mxu0 0.0
  %666 = vmatpush1.msra.mxu0 0.0
  %667 = vmatprep.subr.mxu0 0.0
  %668 = vmatpush1.msra.mxu0 0.0
  %669 = vmatprep.subr.mxu0 0.0
  %670 = vmatpush1.msra.mxu0 0.0
  %671 = vmatprep.subr.mxu0 0.0
  %672 = vmatpush1.msra.mxu0 0.0
  %673 = vmatprep.subr.mxu0 0.0
  %674 = vmatpush1.msra.mxu0 0.0
  %675 = vmatprep.subr.mxu0 0.0
  %676 = vmatpush1.msra.mxu0 0.0
  %677 = vmatprep.subr.mxu0 0.0
  %678 = vmatpush1.msra.mxu0 0.0
  %679 = vmatprep.subr.mxu0 0.0
  %680 = vmatpush1.msra.mxu0 0.0
  %681 = vmatprep.subr.mxu0 0.0
  %682 = vmatpush1.msra.mxu0 0.0
  %683 = vmatprep.subr.mxu0 0.0
  %684 = vmatpush1.msra.mxu0 0.0
  %685 = vmatprep.subr.mxu0 0.0
  %686 = vmatpush1.msra.mxu0 0.0
  %687 = vmatprep.subr.mxu0 0.0
  %688 = vmatpush1.msra.mxu0 0.0
  %689 = vmatprep.subr.mxu0 0.0
  %690 = vmatpush1.msra.mxu0 0.0
  %691 = vmatprep.subr.mxu0 0.0
  %692 = vmatpush1.msra.mxu0 0.0
  %693 = vmatprep.subr.mxu0 0.0
  %694 = vmatpush1.msra.mxu0 0.0
  %695 = vmatprep.subr.mxu0 0.0
  %696 = vmatpush1.msra.mxu0 0.0
  %697 = vmatprep.subr.mxu0 0.0
  %698 = vmatpush1.msra.mxu0 0.0
  %699 = vmatprep.subr.mxu0 0.0
  %700 = vmatpush1.msra.mxu0 0.0
  %701 = vmatprep.subr.mxu0 0.0
  %702 = vmatpush1.msra.mxu0 0.0
  %703 = vmatprep.subr.mxu0 0.0
  %704 = vmatpush1.msra.mxu0 0.0
  %705 = vmatprep.subr.mxu0 0.0
  %706 = vmatpush1.msra.mxu0 0.0
  %707 = vmatprep.subr.mxu0 0.0
  %708 = vmatpush1.msra.mxu0 0.0
  %709 = vmatprep.subr.mxu0 0.0
  %710 = vmatpush1.msra.mxu0 0.0
  %711 = vmatprep.subr.mxu0 0.0
  %712 = vmatpush1.msra.mxu0 0.0
  %713 = vmatprep.subr.mxu0 0.0
  %714 = vmatpush1.msra.mxu0 0.0
  %715 = vmatprep.subr.mxu0 0.0
  %716 = vmatpush1.msra.mxu0 0.0
  %717 = vmatprep.subr.mxu0 0.0
  %718 = vmatpush1.msra.mxu0 0.0
  %719 = vmatprep.mubr.f32.mxu0 0.0
  %720 = vmatmul.mubr.f32.gmra.mrb[0].mxu0 %v653
  %v721 = vpop.f32.mrb[0].mxu0
  %v722 = vadd.f32 0.0, %v721
  %v723 = vpop.f32.mrb[0].mxu0
  %724 = vdwg.mxu0
  %v725 = vadd.f32 %v652, %v722
  %v726 = vxor.u32 %v725, 2147483648
  %v727 = vmul.f32 %v726, 1.442695
  %v728 = vpow.pop %v727
  %v729 = vadd.f32 %v728, 1.0
  %v730 = vrcp.pop %v729
  %v731 = vmul.f32 1.0, %v730
  %v732 = vtanh.pop %v725
  %v733 = vmul.f32 %v731, %v638
  %735 = vrot.lane.b32.xlu0 %v732, 64
  %v736 = vpop.permute.xlu0 %735
  %v738 = vmul.f32 %v731, %v736
  %740 = vrot.lane.b32.xlu0 %v738, 32
  %v741 = vpop.permute.xlu0 %740
  %v743 = vadd.f32 %v733, %v741
  %v744 = vtanh.pop %v743
  %746 = vrot.lane.b32.xlu0 %v744, 64
  %v747 = vpop.permute.xlu0 %746
  %v749 = vmul.f32 %v731, %v747
  %751 = vrot.lane.b32.xlu0 %v749, 32
  %v752 = vpop.permute.xlu0 %751
  %s754 = scalar_lea.vmem [#allocation3], 8
  %755 = vst.msk [vmem:[%s754] sm:$0x3] %vm334, %v752
  %s756 = scalar_lea.vmem [#allocation2], 10
  %v757 = vld [vmem:[%s756] sm:$0x3]
  %v758 = vsel %vm231, %v752, 0
  %760 = vmatprep.subr.mxu0 0.0
  %761 = vmatpush1.msra.mxu0 %v41
  %762 = vmatprep.subr.mxu0 0.0
  %763 = vmatpush1.msra.mxu0 %v42
  %764 = vmatprep.subr.mxu0 0.0
  %765 = vmatpush1.msra.mxu0 %v43
  %766 = vmatprep.subr.mxu0 0.0
  %767 = vmatpush1.msra.mxu0 %v44
  %768 = vmatprep.subr.mxu0 0.0
  %769 = vmatpush1.msra.mxu0 0.0
  %770 = vmatprep.subr.mxu0 0.0
  %771 = vmatpush1.msra.mxu0 0.0
  %772 = vmatprep.subr.mxu0 0.0
  %773 = vmatpush1.msra.mxu0 0.0
  %774 = vmatprep.subr.mxu0 0.0
  %775 = vmatpush1.msra.mxu0 0.0
  %776 = vmatprep.subr.mxu0 0.0
  %777 = vmatpush1.msra.mxu0 0.0
  %778 = vmatprep.subr.mxu0 0.0
  %779 = vmatpush1.msra.mxu0 0.0
  %780 = vmatprep.subr.mxu0 0.0
  %781 = vmatpush1.msra.mxu0 0.0
  %782 = vmatprep.subr.mxu0 0.0
  %783 = vmatpush1.msra.mxu0 0.0
  %784 = vmatprep.subr.mxu0 0.0
  %785 = vmatpush1.msra.mxu0 0.0
  %786 = vmatprep.subr.mxu0 0.0
  %787 = vmatpush1.msra.mxu0 0.0
  %788 = vmatprep.subr.mxu0 0.0
  %789 = vmatpush1.msra.mxu0 0.0
  %790 = vmatprep.subr.mxu0 0.0
  %791 = vmatpush1.msra.mxu0 0.0
  %792 = vmatprep.subr.mxu0 0.0
  %793 = vmatpush1.msra.mxu0 0.0
  %794 = vmatprep.subr.mxu0 0.0
  %795 = vmatpush1.msra.mxu0 0.0
  %796 = vmatprep.subr.mxu0 0.0
  %797 = vmatpush1.msra.mxu0 0.0
  %798 = vmatprep.subr.mxu0 0.0
  %799 = vmatpush1.msra.mxu0 0.0
  %800 = vmatprep.subr.mxu0 0.0
  %801 = vmatpush1.msra.mxu0 0.0
  %802 = vmatprep.subr.mxu0 0.0
  %803 = vmatpush1.msra.mxu0 0.0
  %804 = vmatprep.subr.mxu0 0.0
  %805 = vmatpush1.msra.mxu0 0.0
  %806 = vmatprep.subr.mxu0 0.0
  %807 = vmatpush1.msra.mxu0 0.0
  %808 = vmatprep.subr.mxu0 0.0
  %809 = vmatpush1.msra.mxu0 0.0
  %810 = vmatprep.subr.mxu0 0.0
  %811 = vmatpush1.msra.mxu0 0.0
  %812 = vmatprep.subr.mxu0 0.0
  %813 = vmatpush1.msra.mxu0 0.0
  %814 = vmatprep.subr.mxu0 0.0
  %815 = vmatpush1.msra.mxu0 0.0
  %816 = vmatprep.subr.mxu0 0.0
  %817 = vmatpush1.msra.mxu0 0.0
  %818 = vmatprep.subr.mxu0 0.0
  %819 = vmatpush1.msra.mxu0 0.0
  %820 = vmatprep.subr.mxu0 0.0
  %821 = vmatpush1.msra.mxu0 0.0
  %822 = vmatprep.subr.mxu0 0.0
  %823 = vmatpush1.msra.mxu0 0.0
  %824 = vmatprep.mubr.f32.mxu0 0.0
  %825 = vmatmul.mubr.f32.gmra.mrb[0].mxu0 %v758
  %v826 = vpop.f32.mrb[0].mxu0
  %v827 = vadd.f32 0.0, %v826
  %v828 = vpop.f32.mrb[0].mxu0
  %829 = vdwg.mxu0
  %v830 = vadd.f32 %v757, %v827
  %v831 = vxor.u32 %v830, 2147483648
  %v832 = vmul.f32 %v831, 1.442695
  %v833 = vpow.pop %v832
  %v834 = vadd.f32 %v833, 1.0
  %v835 = vrcp.pop %v834
  %v836 = vmul.f32 1.0, %v835
  %v837 = vtanh.pop %v830
  %v838 = vmul.f32 %v836, %v743
  %840 = vrot.lane.b32.xlu0 %v837, 64
  %v841 = vpop.permute.xlu0 %840
  %v843 = vmul.f32 %v836, %v841
  %845 = vrot.lane.b32.xlu0 %v843, 32
  %v846 = vpop.permute.xlu0 %845
  %v848 = vadd.f32 %v838, %v846
  %v849 = vtanh.pop %v848
  %851 = vrot.lane.b32.xlu0 %v849, 64
  %v852 = vpop.permute.xlu0 %851
  %v854 = vmul.f32 %v836, %v852
  %856 = vrot.lane.b32.xlu0 %v854, 32
  %v857 = vpop.permute.xlu0 %856
  %s859 = scalar_lea.vmem [#allocation3], 10
  %860 = vst.msk [vmem:[%s859] sm:$0x3] %vm334, %v857
  %s861 = scalar_lea.vmem [#allocation2], 12
  %v862 = vld [vmem:[%s861] sm:$0x3]
  %v863 = vsel %vm231, %v857, 0
  %865 = vmatprep.subr.mxu0 0.0
  %866 = vmatpush1.msra.mxu0 %v41
  %867 = vmatprep.subr.mxu0 0.0
  %868 = vmatpush1.msra.mxu0 %v42
  %869 = vmatprep.subr.mxu0 0.0
  %870 = vmatpush1.msra.mxu0 %v43
  %871 = vmatprep.subr.mxu0 0.0
  %872 = vmatpush1.msra.mxu0 %v44
  %873 = vmatprep.subr.mxu0 0.0
  %874 = vmatpush1.msra.mxu0 0.0
  %875 = vmatprep.subr.mxu0 0.0
  %876 = vmatpush1.msra.mxu0 0.0
  %877 = vmatprep.subr.mxu0 0.0
  %878 = vmatpush1.msra.mxu0 0.0
  %879 = vmatprep.subr.mxu0 0.0
  %880 = vmatpush1.msra.mxu0 0.0
  %881 = vmatprep.subr.mxu0 0.0
  %882 = vmatpush1.msra.mxu0 0.0
  %883 = vmatprep.subr.mxu0 0.0
  %884 = vmatpush1.msra.mxu0 0.0
  %885 = vmatprep.subr.mxu0 0.0
  %886 = vmatpush1.msra.mxu0 0.0
  %887 = vmatprep.subr.mxu0 0.0
  %888 = vmatpush1.msra.mxu0 0.0
  %889 = vmatprep.subr.mxu0 0.0
  %890 = vmatpush1.msra.mxu0 0.0
  %891 = vmatprep.subr.mxu0 0.0
  %892 = vmatpush1.msra.mxu0 0.0
  %893 = vmatprep.subr.mxu0 0.0
  %894 = vmatpush1.msra.mxu0 0.0
  %895 = vmatprep.subr.mxu0 0.0
  %896 = vmatpush1.msra.mxu0 0.0
  %897 = vmatprep.subr.mxu0 0.0
  %898 = vmatpush1.msra.mxu0 0.0
  %899 = vmatprep.subr.mxu0 0.0
  %900 = vmatpush1.msra.mxu0 0.0
  %901 = vmatprep.subr.mxu0 0.0
  %902 = vmatpush1.msra.mxu0 0.0
  %903 = vmatprep.subr.mxu0 0.0
  %904 = vmatpush1.msra.mxu0 0.0
  %905 = vmatprep.subr.mxu0 0.0
  %906 = vmatpush1.msra.mxu0 0.0
  %907 = vmatprep.subr.mxu0 0.0
  %908 = vmatpush1.msra.mxu0 0.0
  %909 = vmatprep.subr.mxu0 0.0
  %910 = vmatpush1.msra.mxu0 0.0
  %911 = vmatprep.subr.mxu0 0.0
  %912 = vmatpush1.msra.mxu0 0.0
  %913 = vmatprep.subr.mxu0 0.0
  %914 = vmatpush1.msra.mxu0 0.0
  %915 = vmatprep.subr.mxu0 0.0
  %916 = vmatpush1.msra.mxu0 0.0
  %917 = vmatprep.subr.mxu0 0.0
  %918 = vmatpush1.msra.mxu0 0.0
  %919 = vmatprep.subr.mxu0 0.0
  %920 = vmatpush1.msra.mxu0 0.0
  %921 = vmatprep.subr.mxu0 0.0
  %922 = vmatpush1.msra.mxu0 0.0
  %923 = vmatprep.subr.mxu0 0.0
  %924 = vmatpush1.msra.mxu0 0.0
  %925 = vmatprep.subr.mxu0 0.0
  %926 = vmatpush1.msra.mxu0 0.0
  %927 = vmatprep.subr.mxu0 0.0
  %928 = vmatpush1.msra.mxu0 0.0
  %929 = vmatprep.mubr.f32.mxu0 0.0
  %930 = vmatmul.mubr.f32.gmra.mrb[0].mxu0 %v863
  %v931 = vpop.f32.mrb[0].mxu0
  %v932 = vadd.f32 0.0, %v931
  %v933 = vpop.f32.mrb[0].mxu0
  %934 = vdwg.mxu0
  %v935 = vadd.f32 %v862, %v932
  %v936 = vxor.u32 %v935, 2147483648
  %v937 = vmul.f32 %v936, 1.442695
  %v938 = vpow.pop %v937
  %v939 = vadd.f32 %v938, 1.0
  %v940 = vrcp.pop %v939
  %v941 = vmul.f32 1.0, %v940
  %v942 = vtanh.pop %v935
  %v943 = vmul.f32 %v941, %v848
  %945 = vrot.lane.b32.xlu0 %v942, 64
  %v946 = vpop.permute.xlu0 %945
  %v948 = vmul.f32 %v941, %v946
  %950 = vrot.lane.b32.xlu0 %v948, 32
  %v951 = vpop.permute.xlu0 %950
  %v953 = vadd.f32 %v943, %v951
  %v954 = vtanh.pop %v953
  %956 = vrot.lane.b32.xlu0 %v954, 64
  %v957 = vpop.permute.xlu0 %956
  %v959 = vmul.f32 %v941, %v957
  %961 = vrot.lane.b32.xlu0 %v959, 32
  %v962 = vpop.permute.xlu0 %961
  %s964 = scalar_lea.vmem [#allocation3], 12
  %965 = vst.msk [vmem:[%s964] sm:$0x3] %vm334, %v962
  %s966 = scalar_lea.vmem [#allocation2], 14
  %v967 = vld [vmem:[%s966] sm:$0x3]
  %v968 = vsel %vm231, %v962, 0
  %970 = vmatprep.subr.mxu0 0.0
  %971 = vmatpush1.msra.mxu0 %v41
  %972 = vmatprep.subr.mxu0 0.0
  %973 = vmatpush1.msra.mxu0 %v42
  %974 = vmatprep.subr.mxu0 0.0
  %975 = vmatpush1.msra.mxu0 %v43
  %976 = vmatprep.subr.mxu0 0.0
  %977 = vmatpush1.msra.mxu0 %v44
  %978 = vmatprep.subr.mxu0 0.0
  %979 = vmatpush1.msra.mxu0 0.0
  %980 = vmatprep.subr.mxu0 0.0
  %981 = vmatpush1.msra.mxu0 0.0
  %982 = vmatprep.subr.mxu0 0.0
  %983 = vmatpush1.msra.mxu0 0.0
  %984 = vmatprep.subr.mxu0 0.0
  %985 = vmatpush1.msra.mxu0 0.0
  %986 = vmatprep.subr.mxu0 0.0
  %987 = vmatpush1.msra.mxu0 0.0
  %988 = vmatprep.subr.mxu0 0.0
  %989 = vmatpush1.msra.mxu0 0.0
  %990 = vmatprep.subr.mxu0 0.0
  %991 = vmatpush1.msra.mxu0 0.0
  %992 = vmatprep.subr.mxu0 0.0
  %993 = vmatpush1.msra.mxu0 0.0
  %994 = vmatprep.subr.mxu0 0.0
  %995 = vmatpush1.msra.mxu0 0.0
  %996 = vmatprep.subr.mxu0 0.0
  %997 = vmatpush1.msra.mxu0 0.0
  %998 = vmatprep.subr.mxu0 0.0
  %999 = vmatpush1.msra.mxu0 0.0
  %1000 = vmatprep.subr.mxu0 0.0
  %1001 = vmatpush1.msra.mxu0 0.0
  %1002 = vmatprep.subr.mxu0 0.0
  %1003 = vmatpush1.msra.mxu0 0.0
  %1004 = vmatprep.subr.mxu0 0.0
  %1005 = vmatpush1.msra.mxu0 0.0
  %1006 = vmatprep.subr.mxu0 0.0
  %1007 = vmatpush1.msra.mxu0 0.0
  %1008 = vmatprep.subr.mxu0 0.0
  %1009 = vmatpush1.msra.mxu0 0.0
  %1010 = vmatprep.subr.mxu0 0.0
  %1011 = vmatpush1.msra.mxu0 0.0
  %1012 = vmatprep.subr.mxu0 0.0
  %1013 = vmatpush1.msra.mxu0 0.0
  %1014 = vmatprep.subr.mxu0 0.0
  %1015 = vmatpush1.msra.mxu0 0.0
  %1016 = vmatprep.subr.mxu0 0.0
  %1017 = vmatpush1.msra.mxu0 0.0
  %1018 = vmatprep.subr.mxu0 0.0
  %1019 = vmatpush1.msra.mxu0 0.0
  %1020 = vmatprep.subr.mxu0 0.0
  %1021 = vmatpush1.msra.mxu0 0.0
  %1022 = vmatprep.subr.mxu0 0.0
  %1023 = vmatpush1.msra.mxu0 0.0
  %1024 = vmatprep.subr.mxu0 0.0
  %1025 = vmatpush1.msra.mxu0 0.0
  %1026 = vmatprep.subr.mxu0 0.0
  %1027 = vmatpush1.msra.mxu0 0.0
  %1028 = vmatprep.subr.mxu0 0.0
  %1029 = vmatpush1.msra.mxu0 0.0
  %1030 = vmatprep.subr.mxu0 0.0
  %1031 = vmatpush1.msra.mxu0 0.0
  %1032 = vmatprep.subr.mxu0 0.0
  %1033 = vmatpush1.msra.mxu0 0.0
  %1034 = vmatprep.mubr.f32.mxu0 0.0
  %1035 = vmatmul.mubr.f32.gmra.mrb[0].mxu0 %v968
  %v1036 = vpop.f32.mrb[0].mxu0
  %v1037 = vadd.f32 0.0, %v1036
  %v1038 = vpop.f32.mrb[0].mxu0
  %1039 = vdwg.mxu0
  %v1040 = vadd.f32 %v967, %v1037
  %v1041 = vxor.u32 %v1040, 2147483648
  %v1042 = vmul.f32 %v1041, 1.442695
  %v1043 = vpow.pop %v1042
  %v1044 = vadd.f32 %v1043, 1.0
  %v1045 = vrcp.pop %v1044
  %v1046 = vmul.f32 1.0, %v1045
  %v1047 = vtanh.pop %v1040
  %v1048 = vmul.f32 %v1046, %v953
  %1050 = vrot.lane.b32.xlu0 %v1047, 64
  %v1051 = vpop.permute.xlu0 %1050
  %v1053 = vmul.f32 %v1046, %v1051
  %1055 = vrot.lane.b32.xlu0 %v1053, 32
  %v1056 = vpop.permute.xlu0 %1055
  %v1058 = vadd.f32 %v1048, %v1056
  %v1059 = vtanh.pop %v1058
  %1061 = vrot.lane.b32.xlu0 %v1059, 64
  %v1062 = vpop.permute.xlu0 %1061
  %v1064 = vmul.f32 %v1046, %v1062
  %1066 = vrot.lane.b32.xlu0 %v1064, 32
  %v1067 = vpop.permute.xlu0 %1066
  %s1069 = scalar_lea.vmem [#allocation3], 14
  %1070 = vst.msk [vmem:[%s1069] sm:$0x3] %vm334, %v1067
  %v1071 = vld [vmem:[#allocation3] sm:$0x3]
  %v1072 = vld [vmem:[#allocation3 + $0x2] sm:$0x3]
  %v1073 = vld [vmem:[#allocation3 + $0x4] sm:$0x3]
  %v1074 = vld [vmem:[#allocation3 + $0x6] sm:$0x3]
  %v1075 = vld [vmem:[#allocation3 + $0x8] sm:$0x3]
  %v1076 = vld [vmem:[#allocation3 + $0xa] sm:$0x3]
  %v1077 = vld [vmem:[#allocation3 + $0xc] sm:$0x3]
  %v1078 = vld [vmem:[#allocation3 + $0xe] sm:$0x3]
  %v1079 = vld [vmem:[%s4] sm:$0xff]
  %v1080 = vld [vmem:[%s4 + $0x8] sm:$0xff]
  %v1081 = vld [vmem:[%s4 + $0x10] sm:$0xff]
  %v1082 = vld [vmem:[%s4 + $0x18] sm:$0xff]
  %v1083 = vld [vmem:[%s5] sm:$0xff]
  %v1084 = vld [vmem:[%s5 + $0x8] sm:$0xff]
  %v1085 = vld [vmem:[%s5 + $0x10] sm:$0xff]
  %v1086 = vld [vmem:[%s5 + $0x18] sm:$0xff]
  %v1087 = vld [vmem:[%s6] sm:$0x1]
  %v1089 = vlaneseq
  %v1090 = vshrl.u32 %v1089, 7
  %v1091 = vsub.s32 0, %v1090
  %v1092 = vrot.slane %v1087, %v1091
  %v1102 = vcombine.low %v1071, %v1072
  %v1103 = vcombine.low %v1073, %v1074
  %v1105 = vunpack.c.l.s4 1983009808
  %v1106 = vunpack.c.0.s8 %v1105
  %v1107 = vlaneseq
  %v1108 = vshrl.u32 %v1107, 7
  %v1109 = vsub.s32 %v1106, %v1108
  %v1110 = vrot.slane %v1102, %v1109
  %v1112 = vunpack.c.l.s4 1983009808
  %v1113 = vunpack.c.0.s8 %v1112
  %v1114 = vlaneseq
  %v1115 = vshrl.u32 %v1114, 7
  %v1116 = vsub.s32 %v1113, %v1115
  %v1117 = vrot.slane %v1103, %v1116
  %v1118 = vcombine.low %v1110, %v1117
  %v1119 = vcombine.low %v1075, %v1076
  %v1120 = vcombine.low %v1077, %v1078
  %v1122 = vunpack.c.l.s4 1983009808
  %v1123 = vunpack.c.0.s8 %v1122
  %v1124 = vlaneseq
  %v1125 = vshrl.u32 %v1124, 7
  %v1126 = vsub.s32 %v1123, %v1125
  %v1127 = vrot.slane %v1119, %v1126
  %v1129 = vunpack.c.l.s4 1983009808
  %v1130 = vunpack.c.0.s8 %v1129
  %v1131 = vlaneseq
  %v1132 = vshrl.u32 %v1131, 7
  %v1133 = vsub.s32 %v1130, %v1132
  %v1134 = vrot.slane %v1120, %v1133
  %v1135 = vcombine.low %v1127, %v1134
  %v1136 = vsel %vm231, %v1118, 0
  %v1138 = vsel %vm231, %v1135, 0
  %1140 = vmatprep.subr.mxu0 0.0
  %1141 = vmatpush1.msra.mxu0 %v1079
  %1142 = vmatprep.subr.mxu0 0.0
  %1143 = vmatpush1.msra.mxu0 %v1080
  %1144 = vmatprep.subr.mxu0 0.0
  %1145 = vmatpush1.msra.mxu0 %v1081
  %1146 = vmatprep.subr.mxu0 0.0
  %1147 = vmatpush1.msra.mxu0 %v1082
  %1148 = vmatprep.subr.mxu0 0.0
  %1149 = vmatpush1.msra.mxu0 0.0
  %1150 = vmatprep.subr.mxu0 0.0
  %1151 = vmatpush1.msra.mxu0 0.0
  %1152 = vmatprep.subr.mxu0 0.0
  %1153 = vmatpush1.msra.mxu0 0.0
  %1154 = vmatprep.subr.mxu0 0.0
  %1155 = vmatpush1.msra.mxu0 0.0
  %1156 = vmatprep.subr.mxu0 0.0
  %1157 = vmatpush1.msra.mxu0 0.0
  %1158 = vmatprep.subr.mxu0 0.0
  %1159 = vmatpush1.msra.mxu0 0.0
  %1160 = vmatprep.subr.mxu0 0.0
  %1161 = vmatpush1.msra.mxu0 0.0
  %1162 = vmatprep.subr.mxu0 0.0
  %1163 = vmatpush1.msra.mxu0 0.0
  %1164 = vmatprep.subr.mxu0 0.0
  %1165 = vmatpush1.msra.mxu0 0.0
  %1166 = vmatprep.subr.mxu0 0.0
  %1167 = vmatpush1.msra.mxu0 0.0
  %1168 = vmatprep.subr.mxu0 0.0
  %1169 = vmatpush1.msra.mxu0 0.0
  %1170 = vmatprep.subr.mxu0 0.0
  %1171 = vmatpush1.msra.mxu0 0.0
  %1172 = vmatprep.subr.mxu0 0.0
  %1173 = vmatpush1.msra.mxu0 0.0
  %1174 = vmatprep.subr.mxu0 0.0
  %1175 = vmatpush1.msra.mxu0 0.0
  %1176 = vmatprep.subr.mxu0 0.0
  %1177 = vmatpush1.msra.mxu0 0.0
  %1178 = vmatprep.subr.mxu0 0.0
  %1179 = vmatpush1.msra.mxu0 0.0
  %1180 = vmatprep.subr.mxu0 0.0
  %1181 = vmatpush1.msra.mxu0 0.0
  %1182 = vmatprep.subr.mxu0 0.0
  %1183 = vmatpush1.msra.mxu0 0.0
  %1184 = vmatprep.subr.mxu0 0.0
  %1185 = vmatpush1.msra.mxu0 0.0
  %1186 = vmatprep.subr.mxu0 0.0
  %1187 = vmatpush1.msra.mxu0 0.0
  %1188 = vmatprep.subr.mxu0 0.0
  %1189 = vmatpush1.msra.mxu0 0.0
  %1190 = vmatprep.subr.mxu0 0.0
  %1191 = vmatpush1.msra.mxu0 0.0
  %1192 = vmatprep.subr.mxu0 0.0
  %1193 = vmatpush1.msra.mxu0 0.0
  %1194 = vmatprep.subr.mxu0 0.0
  %1195 = vmatpush1.msra.mxu0 0.0
  %1196 = vmatprep.subr.mxu0 0.0
  %1197 = vmatpush1.msra.mxu0 0.0
  %1198 = vmatprep.subr.mxu0 0.0
  %1199 = vmatpush1.msra.mxu0 0.0
  %1200 = vmatprep.subr.mxu0 0.0
  %1201 = vmatpush1.msra.mxu0 0.0
  %1202 = vmatprep.subr.mxu0 0.0
  %1203 = vmatpush1.msra.mxu0 0.0
  %1204 = vmatprep.mubr.f32.mxu0 0.0
  %1205 = vmatmul.mubr.f32.gmra.mrb[0].mxu0 %v1136
  %v1206 = vpop.f32.mrb[0].mxu0
  %v1207 = vadd.f32 %v1092, %v1206
  %v1208 = vpop.f32.mrb[0].mxu0
  %1209 = vmatprep.mubr.f32.mxu0 0.0
  %1210 = vmatmul.mubr.f32.gmra.mrb[0].mxu0 %v1138
  %v1211 = vpop.f32.mrb[0].mxu0
  %v1212 = vadd.f32 %v1092, %v1211
  %v1213 = vpop.f32.mrb[0].mxu0
  %1214 = vdwg.mxu0
  %v1217 = vcombine.high %v1207, %v1207
  %v1219 = vunpack.c.l.s4 1983009808
  %v1220 = vunpack.c.0.s8 %v1219
  %v1221 = vlaneseq
  %v1222 = vshrl.u32 %v1221, 7
  %v1223 = vsub.s32 %v1220, %v1222
  %v1224 = vrot.slane %v1207, %v1223
  %v1226 = vunpack.c.l.s4 1983009808
  %v1227 = vunpack.c.0.s8 %v1226
  %v1228 = vlaneseq
  %v1229 = vshrl.u32 %v1228, 7
  %v1230 = vsub.s32 %v1227, %v1229
  %v1231 = vrot.slane %v1217, %v1230
  %v1232 = vcombine.high %v1224, %v1224
  %v1233 = vcombine.high %v1231, %v1231
  %v1234 = vcombine.high %v1212, %v1212
  %v1236 = vunpack.c.l.s4 1983009808
  %v1237 = vunpack.c.0.s8 %v1236
  %v1238 = vlaneseq
  %v1239 = vshrl.u32 %v1238, 7
  %v1240 = vsub.s32 %v1237, %v1239
  %v1241 = vrot.slane %v1212, %v1240
  %v1243 = vunpack.c.l.s4 1983009808
  %v1244 = vunpack.c.0.s8 %v1243
  %v1245 = vlaneseq
  %v1246 = vshrl.u32 %v1245, 7
  %v1247 = vsub.s32 %v1244, %v1246
  %v1248 = vrot.slane %v1234, %v1247
  %v1249 = vcombine.high %v1241, %v1241
  %v1250 = vcombine.high %v1248, %v1248
  %1259 = vst [vmem:[#allocation2] sm:$0x3] %v1224
  %1260 = vst [vmem:[#allocation2 + $0x2] sm:$0x3] %v1232
  %1261 = vst [vmem:[#allocation2 + $0x4] sm:$0x3] %v1231
  %1262 = vst [vmem:[#allocation2 + $0x6] sm:$0x3] %v1233
  %1263 = vst [vmem:[#allocation2 + $0x8] sm:$0x3] %v1241
  %1264 = vst [vmem:[#allocation2 + $0xa] sm:$0x3] %v1249
  %1265 = vst [vmem:[#allocation2 + $0xc] sm:$0x3] %v1248
  %1266 = vst [vmem:[#allocation2 + $0xe] sm:$0x3] %v1250
  %v1267 = vld [vmem:[#allocation2] sm:$0x3]
  %1268 = vmatprep.subr.mxu0 0.0
  %1269 = vmatpush1.msra.mxu0 %v1083
  %1270 = vmatprep.subr.mxu0 0.0
  %1271 = vmatpush1.msra.mxu0 %v1084
  %1272 = vmatprep.subr.mxu0 0.0
  %1273 = vmatpush1.msra.mxu0 %v1085
  %1274 = vmatprep.subr.mxu0 0.0
  %1275 = vmatpush1.msra.mxu0 %v1086
  %1276 = vmatprep.subr.mxu0 0.0
  %1277 = vmatpush1.msra.mxu0 0.0
  %1278 = vmatprep.subr.mxu0 0.0
  %1279 = vmatpush1.msra.mxu0 0.0
  %1280 = vmatprep.subr.mxu0 0.0
  %1281 = vmatpush1.msra.mxu0 0.0
  %1282 = vmatprep.subr.mxu0 0.0
  %1283 = vmatpush1.msra.mxu0 0.0
  %1284 = vmatprep.subr.mxu0 0.0
  %1285 = vmatpush1.msra.mxu0 0.0
  %1286 = vmatprep.subr.mxu0 0.0
  %1287 = vmatpush1.msra.mxu0 0.0
  %1288 = vmatprep.subr.mxu0 0.0
  %1289 = vmatpush1.msra.mxu0 0.0
  %1290 = vmatprep.subr.mxu0 0.0
  %1291 = vmatpush1.msra.mxu0 0.0
  %1292 = vmatprep.subr.mxu0 0.0
  %1293 = vmatpush1.msra.mxu0 0.0
  %1294 = vmatprep.subr.mxu0 0.0
  %1295 = vmatpush1.msra.mxu0 0.0
  %1296 = vmatprep.subr.mxu0 0.0
  %1297 = vmatpush1.msra.mxu0 0.0
  %1298 = vmatprep.subr.mxu0 0.0
  %1299 = vmatpush1.msra.mxu0 0.0
  %1300 = vmatprep.subr.mxu0 0.0
  %1301 = vmatpush1.msra.mxu0 0.0
  %1302 = vmatprep.subr.mxu0 0.0
  %1303 = vmatpush1.msra.mxu0 0.0
  %1304 = vmatprep.subr.mxu0 0.0
  %1305 = vmatpush1.msra.mxu0 0.0
  %1306 = vmatprep.subr.mxu0 0.0
  %1307 = vmatpush1.msra.mxu0 0.0
  %1308 = vmatprep.subr.mxu0 0.0
  %1309 = vmatpush1.msra.mxu0 0.0
  %1310 = vmatprep.subr.mxu0 0.0
  %1311 = vmatpush1.msra.mxu0 0.0
  %1312 = vmatprep.subr.mxu0 0.0
  %1313 = vmatpush1.msra.mxu0 0.0
  %1314 = vmatprep.subr.mxu0 0.0
  %1315 = vmatpush1.msra.mxu0 0.0
  %1316 = vmatprep.subr.mxu0 0.0
  %1317 = vmatpush1.msra.mxu0 0.0
  %1318 = vmatprep.subr.mxu0 0.0
  %1319 = vmatpush1.msra.mxu0 0.0
  %1320 = vmatprep.subr.mxu0 0.0
  %1321 = vmatpush1.msra.mxu0 0.0
  %1322 = vmatprep.subr.mxu0 0.0
  %1323 = vmatpush1.msra.mxu0 0.0
  %1324 = vmatprep.subr.mxu0 0.0
  %1325 = vmatpush1.msra.mxu0 0.0
  %1326 = vmatprep.subr.mxu0 0.0
  %1327 = vmatpush1.msra.mxu0 0.0
  %1328 = vmatprep.subr.mxu0 0.0
  %1329 = vmatpush1.msra.mxu0 0.0
  %1330 = vmatprep.subr.mxu0 0.0
  %1331 = vmatpush1.msra.mxu0 0.0
  %1332 = vmatprep.mubr.f32.mxu0 0.0
  %1333 = vmatmul.mubr.f32.gmra.mrb[0].mxu0 %v233
  %v1334 = vpop.f32.mrb[0].mxu0
  %v1335 = vadd.f32 0.0, %v1334
  %v1336 = vpop.f32.mrb[0].mxu0
  %1337 = vdwg.mxu0
  %v1338 = vadd.f32 %v1267, %v1335
  %v1339 = vxor.u32 %v1338, 2147483648
  %v1340 = vmul.f32 %v1339, 1.442695
  %v1341 = vpow.pop %v1340
  %v1342 = vadd.f32 %v1341, 1.0
  %v1343 = vrcp.pop %v1342
  %v1344 = vmul.f32 1.0, %v1343
  %v1345 = vtanh.pop %v1338
  %v1346 = vmul.f32 %v1344, 0.0
  %1348 = vrot.lane.b32.xlu0 %v1345, 64
  %v1349 = vpop.permute.xlu0 %1348
  %v1351 = vmul.f32 %v1344, %v1349
  %1353 = vrot.lane.b32.xlu0 %v1351, 32
  %v1354 = vpop.permute.xlu0 %1353
  %v1356 = vadd.f32 %v1346, %v1354
  %v1357 = vtanh.pop %v1356
  %1359 = vrot.lane.b32.xlu0 %v1357, 64
  %v1360 = vpop.permute.xlu0 %1359
  %v1362 = vmul.f32 %v1344, %v1360
  %1364 = vrot.lane.b32.xlu0 %v1362, 32
  %v1365 = vpop.permute.xlu0 %1364
  %1367 = vst.msk [vmem:[#allocation3] sm:$0x3] %vm334, %v1365
  %v1368 = vld [vmem:[%s336] sm:$0x3]
  %v1369 = vsel %vm231, %v1365, 0
  %1371 = vmatprep.subr.mxu0 0.0
  %1372 = vmatpush1.msra.mxu0 %v1083
  %1373 = vmatprep.subr.mxu0 0.0
  %1374 = vmatpush1.msra.mxu0 %v1084
  %1375 = vmatprep.subr.mxu0 0.0
  %1376 = vmatpush1.msra.mxu0 %v1085
  %1377 = vmatprep.subr.mxu0 0.0
  %1378 = vmatpush1.msra.mxu0 %v1086
  %1379 = vmatprep.subr.mxu0 0.0
  %1380 = vmatpush1.msra.mxu0 0.0
  %1381 = vmatprep.subr.mxu0 0.0
  %1382 = vmatpush1.msra.mxu0 0.0
  %1383 = vmatprep.subr.mxu0 0.0
  %1384 = vmatpush1.msra.mxu0 0.0
  %1385 = vmatprep.subr.mxu0 0.0
  %1386 = vmatpush1.msra.mxu0 0.0
  %1387 = vmatprep.subr.mxu0 0.0
  %1388 = vmatpush1.msra.mxu0 0.0
  %1389 = vmatprep.subr.mxu0 0.0
  %1390 = vmatpush1.msra.mxu0 0.0
  %1391 = vmatprep.subr.mxu0 0.0
  %1392 = vmatpush1.msra.mxu0 0.0
  %1393 = vmatprep.subr.mxu0 0.0
  %1394 = vmatpush1.msra.mxu0 0.0
  %1395 = vmatprep.subr.mxu0 0.0
  %1396 = vmatpush1.msra.mxu0 0.0
  %1397 = vmatprep.subr.mxu0 0.0
  %1398 = vmatpush1.msra.mxu0 0.0
  %1399 = vmatprep.subr.mxu0 0.0
  %1400 = vmatpush1.msra.mxu0 0.0
  %1401 = vmatprep.subr.mxu0 0.0
  %1402 = vmatpush1.msra.mxu0 0.0
  %1403 = vmatprep.subr.mxu0 0.0
  %1404 = vmatpush1.msra.mxu0 0.0
  %1405 = vmatprep.subr.mxu0 0.0
  %1406 = vmatpush1.msra.mxu0 0.0
  %1407 = vmatprep.subr.mxu0 0.0
  %1408 = vmatpush1.msra.mxu0 0.0
  %1409 = vmatprep.subr.mxu0 0.0
  %1410 = vmatpush1.msra.mxu0 0.0
  %1411 = vmatprep.subr.mxu0 0.0
  %1412 = vmatpush1.msra.mxu0 0.0
  %1413 = vmatprep.subr.mxu0 0.0
  %1414 = vmatpush1.msra.mxu0 0.0
  %1415 = vmatprep.subr.mxu0 0.0
  %1416 = vmatpush1.msra.mxu0 0.0
  %1417 = vmatprep.subr.mxu0 0.0
  %1418 = vmatpush1.msra.mxu0 0.0
  %1419 = vmatprep.subr.mxu0 0.0
  %1420 = vmatpush1.msra.mxu0 0.0
  %1421 = vmatprep.subr.mxu0 0.0
  %1422 = vmatpush1.msra.mxu0 0.0
  %1423 = vmatprep.subr.mxu0 0.0
  %1424 = vmatpush1.msra.mxu0 0.0
  %1425 = vmatprep.subr.mxu0 0.0
  %1426 = vmatpush1.msra.mxu0 0.0
  %1427 = vmatprep.subr.mxu0 0.0
  %1428 = vmatpush1.msra.mxu0 0.0
  %1429 = vmatprep.subr.mxu0 0.0
  %1430 = vmatpush1.msra.mxu0 0.0
  %1431 = vmatprep.subr.mxu0 0.0
  %1432 = vmatpush1.msra.mxu0 0.0
  %1433 = vmatprep.subr.mxu0 0.0
  %1434 = vmatpush1.msra.mxu0 0.0
  %1435 = vmatprep.mubr.f32.mxu0 0.0
  %1436 = vmatmul.mubr.f32.gmra.mrb[0].mxu0 %v1369
  %v1437 = vpop.f32.mrb[0].mxu0
  %v1438 = vadd.f32 0.0, %v1437
  %v1439 = vpop.f32.mrb[0].mxu0
  %1440 = vdwg.mxu0
  %v1441 = vadd.f32 %v1368, %v1438
  %v1442 = vxor.u32 %v1441, 2147483648
  %v1443 = vmul.f32 %v1442, 1.442695
  %v1444 = vpow.pop %v1443
  %v1445 = vadd.f32 %v1444, 1.0
  %v1446 = vrcp.pop %v1445
  %v1447 = vmul.f32 1.0, %v1446
  %v1448 = vtanh.pop %v1441
  %v1449 = vmul.f32 %v1447, %v1356
  %1451 = vrot.lane.b32.xlu0 %v1448, 64
  %v1452 = vpop.permute.xlu0 %1451
  %v1454 = vmul.f32 %v1447, %v1452
  %1456 = vrot.lane.b32.xlu0 %v1454, 32
  %v1457 = vpop.permute.xlu0 %1456
  %v1459 = vadd.f32 %v1449, %v1457
  %v1460 = vtanh.pop %v1459
  %1462 = vrot.lane.b32.xlu0 %v1460, 64
  %v1463 = vpop.permute.xlu0 %1462
  %v1465 = vmul.f32 %v1447, %v1463
  %1467 = vrot.lane.b32.xlu0 %v1465, 32
  %v1468 = vpop.permute.xlu0 %1467
  %1470 = vst.msk [vmem:[%s439] sm:$0x3] %vm334, %v1468
  %v1471 = vld [vmem:[%s441] sm:$0x3]
  %v1472 = vsel %vm231, %v1468, 0
  %1474 = vmatprep.subr.mxu0 0.0
  %1475 = vmatpush1.msra.mxu0 %v1083
  %1476 = vmatprep.subr.mxu0 0.0
  %1477 = vmatpush1.msra.mxu0 %v1084
  %1478 = vmatprep.subr.mxu0 0.0
  %1479 = vmatpush1.msra.mxu0 %v1085
  %1480 = vmatprep.subr.mxu0 0.0
  %1481 = vmatpush1.msra.mxu0 %v1086
  %1482 = vmatprep.subr.mxu0 0.0
  %1483 = vmatpush1.msra.mxu0 0.0
  %1484 = vmatprep.subr.mxu0 0.0
  %1485 = vmatpush1.msra.mxu0 0.0
  %1486 = vmatprep.subr.mxu0 0.0
  %1487 = vmatpush1.msra.mxu0 0.0
  %1488 = vmatprep.subr.mxu0 0.0
  %1489 = vmatpush1.msra.mxu0 0.0
  %1490 = vmatprep.subr.mxu0 0.0
  %1491 = vmatpush1.msra.mxu0 0.0
  %1492 = vmatprep.subr.mxu0 0.0
  %1493 = vmatpush1.msra.mxu0 0.0
  %1494 = vmatprep.subr.mxu0 0.0
  %1495 = vmatpush1.msra.mxu0 0.0
  %1496 = vmatprep.subr.mxu0 0.0
  %1497 = vmatpush1.msra.mxu0 0.0
  %1498 = vmatprep.subr.mxu0 0.0
  %1499 = vmatpush1.msra.mxu0 0.0
  %1500 = vmatprep.subr.mxu0 0.0
  %1501 = vmatpush1.msra.mxu0 0.0
  %1502 = vmatprep.subr.mxu0 0.0
  %1503 = vmatpush1.msra.mxu0 0.0
  %1504 = vmatprep.subr.mxu0 0.0
  %1505 = vmatpush1.msra.mxu0 0.0
  %1506 = vmatprep.subr.mxu0 0.0
  %1507 = vmatpush1.msra.mxu0 0.0
  %1508 = vmatprep.subr.mxu0 0.0
  %1509 = vmatpush1.msra.mxu0 0.0
  %1510 = vmatprep.subr.mxu0 0.0
  %1511 = vmatpush1.msra.mxu0 0.0
  %1512 = vmatprep.subr.mxu0 0.0
  %1513 = vmatpush1.msra.mxu0 0.0
  %1514 = vmatprep.subr.mxu0 0.0
  %1515 = vmatpush1.msra.mxu0 0.0
  %1516 = vmatprep.subr.mxu0 0.0
  %1517 = vmatpush1.msra.mxu0 0.0
  %1518 = vmatprep.subr.mxu0 0.0
  %1519 = vmatpush1.msra.mxu0 0.0
  %1520 = vmatprep.subr.mxu0 0.0
  %1521 = vmatpush1.msra.mxu0 0.0
  %1522 = vmatprep.subr.mxu0 0.0
  %1523 = vmatpush1.msra.mxu0 0.0
  %1524 = vmatprep.subr.mxu0 0.0
  %1525 = vmatpush1.msra.mxu0 0.0
  %1526 = vmatprep.subr.mxu0 0.0
  %1527 = vmatpush1.msra.mxu0 0.0
  %1528 = vmatprep.subr.mxu0 0.0
  %1529 = vmatpush1.msra.mxu0 0.0
  %1530 = vmatprep.subr.mxu0 0.0
  %1531 = vmatpush1.msra.mxu0 0.0
  %1532 = vmatprep.subr.mxu0 0.0
  %1533 = vmatpush1.msra.mxu0 0.0
  %1534 = vmatprep.subr.mxu0 0.0
  %1535 = vmatpush1.msra.mxu0 0.0
  %1536 = vmatprep.subr.mxu0 0.0
  %1537 = vmatpush1.msra.mxu0 0.0
  %1538 = vmatprep.mubr.f32.mxu0 0.0
  %1539 = vmatmul.mubr.f32.gmra.mrb[0].mxu0 %v1472
  %v1540 = vpop.f32.mrb[0].mxu0
  %v1541 = vadd.f32 0.0, %v1540
  %v1542 = vpop.f32.mrb[0].mxu0
  %1543 = vdwg.mxu0
  %v1544 = vadd.f32 %v1471, %v1541
  %v1545 = vxor.u32 %v1544, 2147483648
  %v1546 = vmul.f32 %v1545, 1.442695
  %v1547 = vpow.pop %v1546
  %v1548 = vadd.f32 %v1547, 1.0
  %v1549 = vrcp.pop %v1548
  %v1550 = vmul.f32 1.0, %v1549
  %v1551 = vtanh.pop %v1544
  %v1552 = vmul.f32 %v1550, %v1459
  %1554 = vrot.lane.b32.xlu0 %v1551, 64
  %v1555 = vpop.permute.xlu0 %1554
  %v1557 = vmul.f32 %v1550, %v1555
  %1559 = vrot.lane.b32.xlu0 %v1557, 32
  %v1560 = vpop.permute.xlu0 %1559
  %v1562 = vadd.f32 %v1552, %v1560
  %v1563 = vtanh.pop %v1562
  %1565 = vrot.lane.b32.xlu0 %v1563, 64
  %v1566 = vpop.permute.xlu0 %1565
  %v1568 = vmul.f32 %v1550, %v1566
  %1570 = vrot.lane.b32.xlu0 %v1568, 32
  %v1571 = vpop.permute.xlu0 %1570
  %1573 = vst.msk [vmem:[%s544] sm:$0x3] %vm334, %v1571
  %v1574 = vld [vmem:[%s546] sm:$0x3]
  %v1575 = vsel %vm231, %v1571, 0
  %1577 = vmatprep.subr.mxu0 0.0
  %1578 = vmatpush1.msra.mxu0 %v1083
  %1579 = vmatprep.subr.mxu0 0.0
  %1580 = vmatpush1.msra.mxu0 %v1084
  %1581 = vmatprep.subr.mxu0 0.0
  %1582 = vmatpush1.msra.mxu0 %v1085
  %1583 = vmatprep.subr.mxu0 0.0
  %1584 = vmatpush1.msra.mxu0 %v1086
  %1585 = vmatprep.subr.mxu0 0.0
  %1586 = vmatpush1.msra.mxu0 0.0
  %1587 = vmatprep.subr.mxu0 0.0
  %1588 = vmatpush1.msra.mxu0 0.0
  %1589 = vmatprep.subr.mxu0 0.0
  %1590 = vmatpush1.msra.mxu0 0.0
  %1591 = vmatprep.subr.mxu0 0.0
  %1592 = vmatpush1.msra.mxu0 0.0
  %1593 = vmatprep.subr.mxu0 0.0
  %1594 = vmatpush1.msra.mxu0 0.0
  %1595 = vmatprep.subr.mxu0 0.0
  %1596 = vmatpush1.msra.mxu0 0.0
  %1597 = vmatprep.subr.mxu0 0.0
  %1598 = vmatpush1.msra.mxu0 0.0
  %1599 = vmatprep.subr.mxu0 0.0
  %1600 = vmatpush1.msra.mxu0 0.0
  %1601 = vmatprep.subr.mxu0 0.0
  %1602 = vmatpush1.msra.mxu0 0.0
  %1603 = vmatprep.subr.mxu0 0.0
  %1604 = vmatpush1.msra.mxu0 0.0
  %1605 = vmatprep.subr.mxu0 0.0
  %1606 = vmatpush1.msra.mxu0 0.0
  %1607 = vmatprep.subr.mxu0 0.0
  %1608 = vmatpush1.msra.mxu0 0.0
  %1609 = vmatprep.subr.mxu0 0.0
  %1610 = vmatpush1.msra.mxu0 0.0
  %1611 = vmatprep.subr.mxu0 0.0
  %1612 = vmatpush1.msra.mxu0 0.0
  %1613 = vmatprep.subr.mxu0 0.0
  %1614 = vmatpush1.msra.mxu0 0.0
  %1615 = vmatprep.subr.mxu0 0.0
  %1616 = vmatpush1.msra.mxu0 0.0
  %1617 = vmatprep.subr.mxu0 0.0
  %1618 = vmatpush1.msra.mxu0 0.0
  %1619 = vmatprep.subr.mxu0 0.0
  %1620 = vmatpush1.msra.mxu0 0.0
  %1621 = vmatprep.subr.mxu0 0.0
  %1622 = vmatpush1.msra.mxu0 0.0
  %1623 = vmatprep.subr.mxu0 0.0
  %1624 = vmatpush1.msra.mxu0 0.0
  %1625 = vmatprep.subr.mxu0 0.0
  %1626 = vmatpush1.msra.mxu0 0.0
  %1627 = vmatprep.subr.mxu0 0.0
  %1628 = vmatpush1.msra.mxu0 0.0
  %1629 = vmatprep.subr.mxu0 0.0
  %1630 = vmatpush1.msra.mxu0 0.0
  %1631 = vmatprep.subr.mxu0 0.0
  %1632 = vmatpush1.msra.mxu0 0.0
  %1633 = vmatprep.subr.mxu0 0.0
  %1634 = vmatpush1.msra.mxu0 0.0
  %1635 = vmatprep.subr.mxu0 0.0
  %1636 = vmatpush1.msra.mxu0 0.0
  %1637 = vmatprep.subr.mxu0 0.0
  %1638 = vmatpush1.msra.mxu0 0.0
  %1639 = vmatprep.subr.mxu0 0.0
  %1640 = vmatpush1.msra.mxu0 0.0
  %1641 = vmatprep.mubr.f32.mxu0 0.0
  %1642 = vmatmul.mubr.f32.gmra.mrb[0].mxu0 %v1575
  %v1643 = vpop.f32.mrb[0].mxu0
  %v1644 = vadd.f32 0.0, %v1643
  %v1645 = vpop.f32.mrb[0].mxu0
  %1646 = vdwg.mxu0
  %v1647 = vadd.f32 %v1574, %v1644
  %v1648 = vxor.u32 %v1647, 2147483648
  %v1649 = vmul.f32 %v1648, 1.442695
  %v1650 = vpow.pop %v1649
  %v1651 = vadd.f32 %v1650, 1.0
  %v1652 = vrcp.pop %v1651
  %v1653 = vmul.f32 1.0, %v1652
  %v1654 = vtanh.pop %v1647
  %v1655 = vmul.f32 %v1653, %v1562
  %1657 = vrot.lane.b32.xlu0 %v1654, 64
  %v1658 = vpop.permute.xlu0 %1657
  %v1660 = vmul.f32 %v1653, %v1658
  %1662 = vrot.lane.b32.xlu0 %v1660, 32
  %v1663 = vpop.permute.xlu0 %1662
  %v1665 = vadd.f32 %v1655, %v1663
  %v1666 = vtanh.pop %v1665
  %1668 = vrot.lane.b32.xlu0 %v1666, 64
  %v1669 = vpop.permute.xlu0 %1668
  %v1671 = vmul.f32 %v1653, %v1669
  %1673 = vrot.lane.b32.xlu0 %v1671, 32
  %v1674 = vpop.permute.xlu0 %1673
  %1676 = vst.msk [vmem:[%s649] sm:$0x3] %vm334, %v1674
  %v1677 = vld [vmem:[%s651] sm:$0x3]
  %v1678 = vsel %vm231, %v1674, 0
  %1680 = vmatprep.subr.mxu0 0.0
  %1681 = vmatpush1.msra.mxu0 %v1083
  %1682 = vmatprep.subr.mxu0 0.0
  %1683 = vmatpush1.msra.mxu0 %v1084
  %1684 = vmatprep.subr.mxu0 0.0
  %1685 = vmatpush1.msra.mxu0 %v1085
  %1686 = vmatprep.subr.mxu0 0.0
  %1687 = vmatpush1.msra.mxu0 %v1086
  %1688 = vmatprep.subr.mxu0 0.0
  %1689 = vmatpush1.msra.mxu0 0.0
  %1690 = vmatprep.subr.mxu0 0.0
  %1691 = vmatpush1.msra.mxu0 0.0
  %1692 = vmatprep.subr.mxu0 0.0
  %1693 = vmatpush1.msra.mxu0 0.0
  %1694 = vmatprep.subr.mxu0 0.0
  %1695 = vmatpush1.msra.mxu0 0.0
  %1696 = vmatprep.subr.mxu0 0.0
  %1697 = vmatpush1.msra.mxu0 0.0
  %1698 = vmatprep.subr.mxu0 0.0
  %1699 = vmatpush1.msra.mxu0 0.0
  %1700 = vmatprep.subr.mxu0 0.0
  %1701 = vmatpush1.msra.mxu0 0.0
  %1702 = vmatprep.subr.mxu0 0.0
  %1703 = vmatpush1.msra.mxu0 0.0
  %1704 = vmatprep.subr.mxu0 0.0
  %1705 = vmatpush1.msra.mxu0 0.0
  %1706 = vmatprep.subr.mxu0 0.0
  %1707 = vmatpush1.msra.mxu0 0.0
  %1708 = vmatprep.subr.mxu0 0.0
  %1709 = vmatpush1.msra.mxu0 0.0
  %1710 = vmatprep.subr.mxu0 0.0
  %1711 = vmatpush1.msra.mxu0 0.0
  %1712 = vmatprep.subr.mxu0 0.0
  %1713 = vmatpush1.msra.mxu0 0.0
  %1714 = vmatprep.subr.mxu0 0.0
  %1715 = vmatpush1.msra.mxu0 0.0
  %1716 = vmatprep.subr.mxu0 0.0
  %1717 = vmatpush1.msra.mxu0 0.0
  %1718 = vmatprep.subr.mxu0 0.0
  %1719 = vmatpush1.msra.mxu0 0.0
  %1720 = vmatprep.subr.mxu0 0.0
  %1721 = vmatpush1.msra.mxu0 0.0
  %1722 = vmatprep.subr.mxu0 0.0
  %1723 = vmatpush1.msra.mxu0 0.0
  %1724 = vmatprep.subr.mxu0 0.0
  %1725 = vmatpush1.msra.mxu0 0.0
  %1726 = vmatprep.subr.mxu0 0.0
  %1727 = vmatpush1.msra.mxu0 0.0
  %1728 = vmatprep.subr.mxu0 0.0
  %1729 = vmatpush1.msra.mxu0 0.0
  %1730 = vmatprep.subr.mxu0 0.0
  %1731 = vmatpush1.msra.mxu0 0.0
  %1732 = vmatprep.subr.mxu0 0.0
  %1733 = vmatpush1.msra.mxu0 0.0
  %1734 = vmatprep.subr.mxu0 0.0
  %1735 = vmatpush1.msra.mxu0 0.0
  %1736 = vmatprep.subr.mxu0 0.0
  %1737 = vmatpush1.msra.mxu0 0.0
  %1738 = vmatprep.subr.mxu0 0.0
  %1739 = vmatpush1.msra.mxu0 0.0
  %1740 = vmatprep.subr.mxu0 0.0
  %1741 = vmatpush1.msra.mxu0 0.0
  %1742 = vmatprep.subr.mxu0 0.0
  %1743 = vmatpush1.msra.mxu0 0.0
  %1744 = vmatprep.mubr.f32.mxu0 0.0
  %1745 = vmatmul.mubr.f32.gmra.mrb[0].mxu0 %v1678
  %v1746 = vpop.f32.mrb[0].mxu0
  %v1747 = vadd.f32 0.0, %v1746
  %v1748 = vpop.f32.mrb[0].mxu0
  %1749 = vdwg.mxu0
  %v1750 = vadd.f32 %v1677, %v1747
  %v1751 = vxor.u32 %v1750, 2147483648
  %v1752 = vmul.f32 %v1751, 1.442695
  %v1753 = vpow.pop %v1752
  %v1754 = vadd.f32 %v1753, 1.0
  %v1755 = vrcp.pop %v1754
  %v1756 = vmul.f32 1.0, %v1755
  %v1757 = vtanh.pop %v1750
  %v1758 = vmul.f32 %v1756, %v1665
  %1760 = vrot.lane.b32.xlu0 %v1757, 64
  %v1761 = vpop.permute.xlu0 %1760
  %v1763 = vmul.f32 %v1756, %v1761
  %1765 = vrot.lane.b32.xlu0 %v1763, 32
  %v1766 = vpop.permute.xlu0 %1765
  %v1768 = vadd.f32 %v1758, %v1766
  %v1769 = vtanh.pop %v1768
  %1771 = vrot.lane.b32.xlu0 %v1769, 64
  %v1772 = vpop.permute.xlu0 %1771
  %v1774 = vmul.f32 %v1756, %v1772
  %1776 = vrot.lane.b32.xlu0 %v1774, 32
  %v1777 = vpop.permute.xlu0 %1776
  %1779 = vst.msk [vmem:[%s754] sm:$0x3] %vm334, %v1777
  %v1780 = vld [vmem:[%s756] sm:$0x3]
  %v1781 = vsel %vm231, %v1777, 0
  %1783 = vmatprep.subr.mxu0 0.0
  %1784 = vmatpush1.msra.mxu0 %v1083
  %1785 = vmatprep.subr.mxu0 0.0
  %1786 = vmatpush1.msra.mxu0 %v1084
  %1787 = vmatprep.subr.mxu0 0.0
  %1788 = vmatpush1.msra.mxu0 %v1085
  %1789 = vmatprep.subr.mxu0 0.0
  %1790 = vmatpush1.msra.mxu0 %v1086
  %1791 = vmatprep.subr.mxu0 0.0
  %1792 = vmatpush1.msra.mxu0 0.0
  %1793 = vmatprep.subr.mxu0 0.0
  %1794 = vmatpush1.msra.mxu0 0.0
  %1795 = vmatprep.subr.mxu0 0.0
  %1796 = vmatpush1.msra.mxu0 0.0
  %1797 = vmatprep.subr.mxu0 0.0
  %1798 = vmatpush1.msra.mxu0 0.0
  %1799 = vmatprep.subr.mxu0 0.0
  %1800 = vmatpush1.msra.mxu0 0.0
  %1801 = vmatprep.subr.mxu0 0.0
  %1802 = vmatpush1.msra.mxu0 0.0
  %1803 = vmatprep.subr.mxu0 0.0
  %1804 = vmatpush1.msra.mxu0 0.0
  %1805 = vmatprep.subr.mxu0 0.0
  %1806 = vmatpush1.msra.mxu0 0.0
  %1807 = vmatprep.subr.mxu0 0.0
  %1808 = vmatpush1.msra.mxu0 0.0
  %1809 = vmatprep.subr.mxu0 0.0
  %1810 = vmatpush1.msra.mxu0 0.0
  %1811 = vmatprep.subr.mxu0 0.0
  %1812 = vmatpush1.msra.mxu0 0.0
  %1813 = vmatprep.subr.mxu0 0.0
  %1814 = vmatpush1.msra.mxu0 0.0
  %1815 = vmatprep.subr.mxu0 0.0
  %1816 = vmatpush1.msra.mxu0 0.0
  %1817 = vmatprep.subr.mxu0 0.0
  %1818 = vmatpush1.msra.mxu0 0.0
  %1819 = vmatprep.subr.mxu0 0.0
  %1820 = vmatpush1.msra.mxu0 0.0
  %1821 = vmatprep.subr.mxu0 0.0
  %1822 = vmatpush1.msra.mxu0 0.0
  %1823 = vmatprep.subr.mxu0 0.0
  %1824 = vmatpush1.msra.mxu0 0.0
  %1825 = vmatprep.subr.mxu0 0.0
  %1826 = vmatpush1.msra.mxu0 0.0
  %1827 = vmatprep.subr.mxu0 0.0
  %1828 = vmatpush1.msra.mxu0 0.0
  %1829 = vmatprep.subr.mxu0 0.0
  %1830 = vmatpush1.msra.mxu0 0.0
  %1831 = vmatprep.subr.mxu0 0.0
  %1832 = vmatpush1.msra.mxu0 0.0
  %1833 = vmatprep.subr.mxu0 0.0
  %1834 = vmatpush1.msra.mxu0 0.0
  %1835 = vmatprep.subr.mxu0 0.0
  %1836 = vmatpush1.msra.mxu0 0.0
  %1837 = vmatprep.subr.mxu0 0.0
  %1838 = vmatpush1.msra.mxu0 0.0
  %1839 = vmatprep.subr.mxu0 0.0
  %1840 = vmatpush1.msra.mxu0 0.0
  %1841 = vmatprep.subr.mxu0 0.0
  %1842 = vmatpush1.msra.mxu0 0.0
  %1843 = vmatprep.subr.mxu0 0.0
  %1844 = vmatpush1.msra.mxu0 0.0
  %1845 = vmatprep.subr.mxu0 0.0
  %1846 = vmatpush1.msra.mxu0 0.0
  %1847 = vmatprep.mubr.f32.mxu0 0.0
  %1848 = vmatmul.mubr.f32.gmra.mrb[0].mxu0 %v1781
  %v1849 = vpop.f32.mrb[0].mxu0
  %v1850 = vadd.f32 0.0, %v1849
  %v1851 = vpop.f32.mrb[0].mxu0
  %1852 = vdwg.mxu0
  %v1853 = vadd.f32 %v1780, %v1850
  %v1854 = vxor.u32 %v1853, 2147483648
  %v1855 = vmul.f32 %v1854, 1.442695
  %v1856 = vpow.pop %v1855
  %v1857 = vadd.f32 %v1856, 1.0
  %v1858 = vrcp.pop %v1857
  %v1859 = vmul.f32 1.0, %v1858
  %v1860 = vtanh.pop %v1853
  %v1861 = vmul.f32 %v1859, %v1768
  %1863 = vrot.lane.b32.xlu0 %v1860, 64
  %v1864 = vpop.permute.xlu0 %1863
  %v1866 = vmul.f32 %v1859, %v1864
  %1868 = vrot.lane.b32.xlu0 %v1866, 32
  %v1869 = vpop.permute.xlu0 %1868
  %v1871 = vadd.f32 %v1861, %v1869
  %v1872 = vtanh.pop %v1871
  %1874 = vrot.lane.b32.xlu0 %v1872, 64
  %v1875 = vpop.permute.xlu0 %1874
  %v1877 = vmul.f32 %v1859, %v1875
  %1879 = vrot.lane.b32.xlu0 %v1877, 32
  %v1880 = vpop.permute.xlu0 %1879
  %1882 = vst.msk [vmem:[%s859] sm:$0x3] %vm334, %v1880
  %v1883 = vld [vmem:[%s861] sm:$0x3]
  %v1884 = vsel %vm231, %v1880, 0
  %1886 = vmatprep.subr.mxu0 0.0
  %1887 = vmatpush1.msra.mxu0 %v1083
  %1888 = vmatprep.subr.mxu0 0.0
  %1889 = vmatpush1.msra.mxu0 %v1084
  %1890 = vmatprep.subr.mxu0 0.0
  %1891 = vmatpush1.msra.mxu0 %v1085
  %1892 = vmatprep.subr.mxu0 0.0
  %1893 = vmatpush1.msra.mxu0 %v1086
  %1894 = vmatprep.subr.mxu0 0.0
  %1895 = vmatpush1.msra.mxu0 0.0
  %1896 = vmatprep.subr.mxu0 0.0
  %1897 = vmatpush1.msra.mxu0 0.0
  %1898 = vmatprep.subr.mxu0 0.0
  %1899 = vmatpush1.msra.mxu0 0.0
  %1900 = vmatprep.subr.mxu0 0.0
  %1901 = vmatpush1.msra.mxu0 0.0
  %1902 = vmatprep.subr.mxu0 0.0
  %1903 = vmatpush1.msra.mxu0 0.0
  %1904 = vmatprep.subr.mxu0 0.0
  %1905 = vmatpush1.msra.mxu0 0.0
  %1906 = vmatprep.subr.mxu0 0.0
  %1907 = vmatpush1.msra.mxu0 0.0
  %1908 = vmatprep.subr.mxu0 0.0
  %1909 = vmatpush1.msra.mxu0 0.0
  %1910 = vmatprep.subr.mxu0 0.0
  %1911 = vmatpush1.msra.mxu0 0.0
  %1912 = vmatprep.subr.mxu0 0.0
  %1913 = vmatpush1.msra.mxu0 0.0
  %1914 = vmatprep.subr.mxu0 0.0
  %1915 = vmatpush1.msra.mxu0 0.0
  %1916 = vmatprep.subr.mxu0 0.0
  %1917 = vmatpush1.msra.mxu0 0.0
  %1918 = vmatprep.subr.mxu0 0.0
  %1919 = vmatpush1.msra.mxu0 0.0
  %1920 = vmatprep.subr.mxu0 0.0
  %1921 = vmatpush1.msra.mxu0 0.0
  %1922 = vmatprep.subr.mxu0 0.0
  %1923 = vmatpush1.msra.mxu0 0.0
  %1924 = vmatprep.subr.mxu0 0.0
  %1925 = vmatpush1.msra.mxu0 0.0
  %1926 = vmatprep.subr.mxu0 0.0
  %1927 = vmatpush1.msra.mxu0 0.0
  %1928 = vmatprep.subr.mxu0 0.0
  %1929 = vmatpush1.msra.mxu0 0.0
  %1930 = vmatprep.subr.mxu0 0.0
  %1931 = vmatpush1.msra.mxu0 0.0
  %1932 = vmatprep.subr.mxu0 0.0
  %1933 = vmatpush1.msra.mxu0 0.0
  %1934 = vmatprep.subr.mxu0 0.0
  %1935 = vmatpush1.msra.mxu0 0.0
  %1936 = vmatprep.subr.mxu0 0.0
  %1937 = vmatpush1.msra.mxu0 0.0
  %1938 = vmatprep.subr.mxu0 0.0
  %1939 = vmatpush1.msra.mxu0 0.0
  %1940 = vmatprep.subr.mxu0 0.0
  %1941 = vmatpush1.msra.mxu0 0.0
  %1942 = vmatprep.subr.mxu0 0.0
  %1943 = vmatpush1.msra.mxu0 0.0
  %1944 = vmatprep.subr.mxu0 0.0
  %1945 = vmatpush1.msra.mxu0 0.0
  %1946 = vmatprep.subr.mxu0 0.0
  %1947 = vmatpush1.msra.mxu0 0.0
  %1948 = vmatprep.subr.mxu0 0.0
  %1949 = vmatpush1.msra.mxu0 0.0
  %1950 = vmatprep.mubr.f32.mxu0 0.0
  %1951 = vmatmul.mubr.f32.gmra.mrb[0].mxu0 %v1884
  %v1952 = vpop.f32.mrb[0].mxu0
  %v1953 = vadd.f32 0.0, %v1952
  %v1954 = vpop.f32.mrb[0].mxu0
  %1955 = vdwg.mxu0
  %v1956 = vadd.f32 %v1883, %v1953
  %v1957 = vxor.u32 %v1956, 2147483648
  %v1958 = vmul.f32 %v1957, 1.442695
  %v1959 = vpow.pop %v1958
  %v1960 = vadd.f32 %v1959, 1.0
  %v1961 = vrcp.pop %v1960
  %v1962 = vmul.f32 1.0, %v1961
  %v1963 = vtanh.pop %v1956
  %v1964 = vmul.f32 %v1962, %v1871
  %1966 = vrot.lane.b32.xlu0 %v1963, 64
  %v1967 = vpop.permute.xlu0 %1966
  %v1969 = vmul.f32 %v1962, %v1967
  %1971 = vrot.lane.b32.xlu0 %v1969, 32
  %v1972 = vpop.permute.xlu0 %1971
  %v1974 = vadd.f32 %v1964, %v1972
  %v1975 = vtanh.pop %v1974
  %1977 = vrot.lane.b32.xlu0 %v1975, 64
  %v1978 = vpop.permute.xlu0 %1977
  %v1980 = vmul.f32 %v1962, %v1978
  %1982 = vrot.lane.b32.xlu0 %v1980, 32
  %v1983 = vpop.permute.xlu0 %1982
  %1985 = vst.msk [vmem:[%s964] sm:$0x3] %vm334, %v1983
  %v1986 = vld [vmem:[%s966] sm:$0x3]
  %v1987 = vsel %vm231, %v1983, 0
  %1989 = vmatprep.subr.mxu0 0.0
  %1990 = vmatpush1.msra.mxu0 %v1083
  %1991 = vmatprep.subr.mxu0 0.0
  %1992 = vmatpush1.msra.mxu0 %v1084
  %1993 = vmatprep.subr.mxu0 0.0
  %1994 = vmatpush1.msra.mxu0 %v1085
  %1995 = vmatprep.subr.mxu0 0.0
  %1996 = vmatpush1.msra.mxu0 %v1086
  %1997 = vmatprep.subr.mxu0 0.0
  %1998 = vmatpush1.msra.mxu0 0.0
  %1999 = vmatprep.subr.mxu0 0.0
  %2000 = vmatpush1.msra.mxu0 0.0
  %2001 = vmatprep.subr.mxu0 0.0
  %2002 = vmatpush1.msra.mxu0 0.0
  %2003 = vmatprep.subr.mxu0 0.0
  %2004 = vmatpush1.msra.mxu0 0.0
  %2005 = vmatprep.subr.mxu0 0.0
  %2006 = vmatpush1.msra.mxu0 0.0
  %2007 = vmatprep.subr.mxu0 0.0
  %2008 = vmatpush1.msra.mxu0 0.0
  %2009 = vmatprep.subr.mxu0 0.0
  %2010 = vmatpush1.msra.mxu0 0.0
  %2011 = vmatprep.subr.mxu0 0.0
  %2012 = vmatpush1.msra.mxu0 0.0
  %2013 = vmatprep.subr.mxu0 0.0
  %2014 = vmatpush1.msra.mxu0 0.0
  %2015 = vmatprep.subr.mxu0 0.0
  %2016 = vmatpush1.msra.mxu0 0.0
  %2017 = vmatprep.subr.mxu0 0.0
  %2018 = vmatpush1.msra.mxu0 0.0
  %2019 = vmatprep.subr.mxu0 0.0
  %2020 = vmatpush1.msra.mxu0 0.0
  %2021 = vmatprep.subr.mxu0 0.0
  %2022 = vmatpush1.msra.mxu0 0.0
  %2023 = vmatprep.subr.mxu0 0.0
  %2024 = vmatpush1.msra.mxu0 0.0
  %2025 = vmatprep.subr.mxu0 0.0
  %2026 = vmatpush1.msra.mxu0 0.0
  %2027 = vmatprep.subr.mxu0 0.0
  %2028 = vmatpush1.msra.mxu0 0.0
  %2029 = vmatprep.subr.mxu0 0.0
  %2030 = vmatpush1.msra.mxu0 0.0
  %2031 = vmatprep.subr.mxu0 0.0
  %2032 = vmatpush1.msra.mxu0 0.0
  %2033 = vmatprep.subr.mxu0 0.0
  %2034 = vmatpush1.msra.mxu0 0.0
  %2035 = vmatprep.subr.mxu0 0.0
  %2036 = vmatpush1.msra.mxu0 0.0
  %2037 = vmatprep.subr.mxu0 0.0
  %2038 = vmatpush1.msra.mxu0 0.0
  %2039 = vmatprep.subr.mxu0 0.0
  %2040 = vmatpush1.msra.mxu0 0.0
  %2041 = vmatprep.subr.mxu0 0.0
  %2042 = vmatpush1.msra.mxu0 0.0
  %2043 = vmatprep.subr.mxu0 0.0
  %2044 = vmatpush1.msra.mxu0 0.0
  %2045 = vmatprep.subr.mxu0 0.0
  %2046 = vmatpush1.msra.mxu0 0.0
  %2047 = vmatprep.subr.mxu0 0.0
  %2048 = vmatpush1.msra.mxu0 0.0
  %2049 = vmatprep.subr.mxu0 0.0
  %2050 = vmatpush1.msra.mxu0 0.0
  %2051 = vmatprep.subr.mxu0 0.0
  %2052 = vmatpush1.msra.mxu0 0.0
  %2053 = vmatprep.mubr.f32.mxu0 0.0
  %2054 = vmatmul.mubr.f32.gmra.mrb[0].mxu0 %v1987
  %v2055 = vpop.f32.mrb[0].mxu0
  %v2056 = vadd.f32 0.0, %v2055
  %v2057 = vpop.f32.mrb[0].mxu0
  %2058 = vdwg.mxu0
  %v2059 = vadd.f32 %v1986, %v2056
  %v2060 = vxor.u32 %v2059, 2147483648
  %v2061 = vmul.f32 %v2060, 1.442695
  %v2062 = vpow.pop %v2061
  %v2063 = vadd.f32 %v2062, 1.0
  %v2064 = vrcp.pop %v2063
  %v2065 = vmul.f32 1.0, %v2064
  %v2066 = vtanh.pop %v2059
  %v2067 = vmul.f32 %v2065, %v1974
  %2069 = vrot.lane.b32.xlu0 %v2066, 64
  %v2070 = vpop.permute.xlu0 %2069
  %v2072 = vmul.f32 %v2065, %v2070
  %2074 = vrot.lane.b32.xlu0 %v2072, 32
  %v2075 = vpop.permute.xlu0 %2074
  %v2077 = vadd.f32 %v2067, %v2075
  %v2078 = vtanh.pop %v2077
  %2080 = vrot.lane.b32.xlu0 %v2078, 64
  %v2081 = vpop.permute.xlu0 %2080
  %v2083 = vmul.f32 %v2065, %v2081
  %2085 = vrot.lane.b32.xlu0 %v2083, 32
  %v2086 = vpop.permute.xlu0 %2085
  %2088 = vst.msk [vmem:[%s1069] sm:$0x3] %vm334, %v2086
  %v2089 = vld [vmem:[#allocation3] sm:$0x3]
  %v2090 = vld [vmem:[#allocation3 + $0x2] sm:$0x3]
  %v2091 = vld [vmem:[#allocation3 + $0x4] sm:$0x3]
  %v2092 = vld [vmem:[#allocation3 + $0x6] sm:$0x3]
  %v2093 = vld [vmem:[#allocation3 + $0x8] sm:$0x3]
  %v2094 = vld [vmem:[#allocation3 + $0xa] sm:$0x3]
  %v2095 = vld [vmem:[#allocation3 + $0xc] sm:$0x3]
  %v2096 = vld [vmem:[#allocation3 + $0xe] sm:$0x3]
  %v2097 = vld [vmem:[%s7] sm:$0xff]
  %v2098 = vld [vmem:[%s7 + $0x8] sm:$0xff]
  %v2099 = vld [vmem:[%s7 + $0x10] sm:$0xff]
  %v2100 = vld [vmem:[%s7 + $0x18] sm:$0xff]
  %v2101 = vld [vmem:[%s8] sm:$0x1]
  %v2103 = vlaneseq
  %v2104 = vshrl.u32 %v2103, 7
  %v2105 = vsub.s32 0, %v2104
  %v2106 = vrot.slane %v2101, %v2105
  %v2116 = vcombine.low %v2089, %v2090
  %v2117 = vcombine.low %v2091, %v2092
  %v2119 = vunpack.c.l.s4 1983009808
  %v2120 = vunpack.c.0.s8 %v2119
  %v2121 = vlaneseq
  %v2122 = vshrl.u32 %v2121, 7
  %v2123 = vsub.s32 %v2120, %v2122
  %v2124 = vrot.slane %v2116, %v2123
  %v2126 = vunpack.c.l.s4 1983009808
  %v2127 = vunpack.c.0.s8 %v2126
  %v2128 = vlaneseq
  %v2129 = vshrl.u32 %v2128, 7
  %v2130 = vsub.s32 %v2127, %v2129
  %v2131 = vrot.slane %v2117, %v2130
  %v2132 = vcombine.low %v2124, %v2131
  %v2133 = vcombine.low %v2093, %v2094
  %v2134 = vcombine.low %v2095, %v2096
  %v2136 = vunpack.c.l.s4 1983009808
  %v2137 = vunpack.c.0.s8 %v2136
  %v2138 = vlaneseq
  %v2139 = vshrl.u32 %v2138, 7
  %v2140 = vsub.s32 %v2137, %v2139
  %v2141 = vrot.slane %v2133, %v2140
  %v2143 = vunpack.c.l.s4 1983009808
  %v2144 = vunpack.c.0.s8 %v2143
  %v2145 = vlaneseq
  %v2146 = vshrl.u32 %v2145, 7
  %v2147 = vsub.s32 %v2144, %v2146
  %v2148 = vrot.slane %v2134, %v2147
  %v2149 = vcombine.low %v2141, %v2148
  %v2150 = vsel %vm231, %v2132, 0
  %v2152 = vsel %vm231, %v2149, 0
  %2154 = vmatprep.subr.mxu0 0.0
  %2155 = vmatpush1.msra.mxu0 %v2097
  %2156 = vmatprep.subr.mxu0 0.0
  %2157 = vmatpush1.msra.mxu0 %v2098
  %2158 = vmatprep.subr.mxu0 0.0
  %2159 = vmatpush1.msra.mxu0 %v2099
  %2160 = vmatprep.subr.mxu0 0.0
  %2161 = vmatpush1.msra.mxu0 %v2100
  %2162 = vmatprep.subr.mxu0 0.0
  %2163 = vmatpush1.msra.mxu0 0.0
  %2164 = vmatprep.subr.mxu0 0.0
  %2165 = vmatpush1.msra.mxu0 0.0
  %2166 = vmatprep.subr.mxu0 0.0
  %2167 = vmatpush1.msra.mxu0 0.0
  %2168 = vmatprep.subr.mxu0 0.0
  %2169 = vmatpush1.msra.mxu0 0.0
  %2170 = vmatprep.subr.mxu0 0.0
  %2171 = vmatpush1.msra.mxu0 0.0
  %2172 = vmatprep.subr.mxu0 0.0
  %2173 = vmatpush1.msra.mxu0 0.0
  %2174 = vmatprep.subr.mxu0 0.0
  %2175 = vmatpush1.msra.mxu0 0.0
  %2176 = vmatprep.subr.mxu0 0.0
  %2177 = vmatpush1.msra.mxu0 0.0
  %2178 = vmatprep.subr.mxu0 0.0
  %2179 = vmatpush1.msra.mxu0 0.0
  %2180 = vmatprep.subr.mxu0 0.0
  %2181 = vmatpush1.msra.mxu0 0.0
  %2182 = vmatprep.subr.mxu0 0.0
  %2183 = vmatpush1.msra.mxu0 0.0
  %2184 = vmatprep.subr.mxu0 0.0
  %2185 = vmatpush1.msra.mxu0 0.0
  %2186 = vmatprep.subr.mxu0 0.0
  %2187 = vmatpush1.msra.mxu0 0.0
  %2188 = vmatprep.subr.mxu0 0.0
  %2189 = vmatpush1.msra.mxu0 0.0
  %2190 = vmatprep.subr.mxu0 0.0
  %2191 = vmatpush1.msra.mxu0 0.0
  %2192 = vmatprep.subr.mxu0 0.0
  %2193 = vmatpush1.msra.mxu0 0.0
  %2194 = vmatprep.subr.mxu0 0.0
  %2195 = vmatpush1.msra.mxu0 0.0
  %2196 = vmatprep.subr.mxu0 0.0
  %2197 = vmatpush1.msra.mxu0 0.0
  %2198 = vmatprep.subr.mxu0 0.0
  %2199 = vmatpush1.msra.mxu0 0.0
  %2200 = vmatprep.subr.mxu0 0.0
  %2201 = vmatpush1.msra.mxu0 0.0
  %2202 = vmatprep.subr.mxu0 0.0
  %2203 = vmatpush1.msra.mxu0 0.0
  %2204 = vmatprep.subr.mxu0 0.0
  %2205 = vmatpush1.msra.mxu0 0.0
  %2206 = vmatprep.subr.mxu0 0.0
  %2207 = vmatpush1.msra.mxu0 0.0
  %2208 = vmatprep.subr.mxu0 0.0
  %2209 = vmatpush1.msra.mxu0 0.0
  %2210 = vmatprep.subr.mxu0 0.0
  %2211 = vmatpush1.msra.mxu0 0.0
  %2212 = vmatprep.subr.mxu0 0.0
  %2213 = vmatpush1.msra.mxu0 0.0
  %2214 = vmatprep.subr.mxu0 0.0
  %2215 = vmatpush1.msra.mxu0 0.0
  %2216 = vmatprep.subr.mxu0 0.0
  %2217 = vmatpush1.msra.mxu0 0.0
  %2218 = vmatprep.mubr.f32.mxu0 0.0
  %2219 = vmatmul.mubr.f32.gmra.mrb[0].mxu0 %v2150
  %v2220 = vpop.f32.mrb[0].mxu0
  %v2221 = vadd.f32 %v2106, %v2220
  %v2222 = vpop.f32.mrb[0].mxu0
  %2223 = vmatprep.mubr.f32.mxu0 0.0
  %2224 = vmatmul.mubr.f32.gmra.mrb[0].mxu0 %v2152
  %v2225 = vpop.f32.mrb[0].mxu0
  %v2226 = vadd.f32 %v2106, %v2225
  %v2227 = vpop.f32.mrb[0].mxu0
  %2228 = vdwg.mxu0
  %v2231 = vcombine.high %v2221, %v2221
  %v2233 = vunpack.c.l.s4 1983009808
  %v2234 = vunpack.c.0.s8 %v2233
  %v2235 = vlaneseq
  %v2236 = vshrl.u32 %v2235, 7
  %v2237 = vsub.s32 %v2234, %v2236
  %v2238 = vrot.slane %v2221, %v2237
  %v2240 = vunpack.c.l.s4 1983009808
  %v2241 = vunpack.c.0.s8 %v2240
  %v2242 = vlaneseq
  %v2243 = vshrl.u32 %v2242, 7
  %v2244 = vsub.s32 %v2241, %v2243
  %v2245 = vrot.slane %v2231, %v2244
  %v2246 = vcombine.high %v2238, %v2238
  %v2247 = vcombine.high %v2245, %v2245
  %v2248 = vcombine.high %v2226, %v2226
  %v2250 = vunpack.c.l.s4 1983009808
  %v2251 = vunpack.c.0.s8 %v2250
  %v2252 = vlaneseq
  %v2253 = vshrl.u32 %v2252, 7
  %v2254 = vsub.s32 %v2251, %v2253
  %v2255 = vrot.slane %v2226, %v2254
  %v2257 = vunpack.c.l.s4 1983009808
  %v2258 = vunpack.c.0.s8 %v2257
  %v2259 = vlaneseq
  %v2260 = vshrl.u32 %v2259, 7
  %v2261 = vsub.s32 %v2258, %v2260
  %v2262 = vrot.slane %v2248, %v2261
  %v2263 = vcombine.high %v2255, %v2255
  %v2264 = vcombine.high %v2262, %v2262
  %2273 = vst [vmem:[%s9] sm:$0x3] %v2238
  %2274 = vst [vmem:[%s9 + $0x2] sm:$0x3] %v2246
  %2275 = vst [vmem:[%s9 + $0x4] sm:$0x3] %v2245
  %2276 = vst [vmem:[%s9 + $0x6] sm:$0x3] %v2247
  %2277 = vst [vmem:[%s9 + $0x8] sm:$0x3] %v2255
  %2278 = vst [vmem:[%s9 + $0xa] sm:$0x3] %v2263
  %2279 = vst [vmem:[%s9 + $0xc] sm:$0x3] %v2262
  %2280 = vst [vmem:[%s9 + $0xe] sm:$0x3] %v2264
  // Predicated region
  $region38: #{validate_lstm_quantile_forward.1} parent=0 // pred_check
    _
  $region39: #{validate_lstm_quantile_forward.1} parent=0 // pred_check_branch
    %2282 = sbr.rel (0) target = $region41
  $region40: #{validate_lstm_quantile_forward.1} parent=0 // pred_region
    _
  $region41: #{validate_lstm_quantile_forward.1} parent=0 // pred_fallthru
    _
  // Predicated region
  $region42: #{validate_lstm_quantile_forward.1} parent=0 // pred_check
    _
  $region43: #{validate_lstm_quantile_forward.1} parent=0 // pred_check_branch
    %2284 = sbr.rel (0) target = $region45
  $region44: #{validate_lstm_quantile_forward.1} parent=0 // pred_region
    _
  $region45: #{validate_lstm_quantile_forward.1} parent=0 // pred_fallthru
    _

</llo_original>
